<compile_context>
chip_gen: v6e
topology: v6e:2x2x1
jax: 0.10.0
libtpu: 0.0.40
codegen_flags: <defaults>
</compile_context>

<pallas_src>
import functools

import jax
import jax.numpy as jnp
from jax.experimental import pallas as pl
from jax.experimental.pallas import tpu as pltpu


def _round_up(v, m):
    return (v + m - 1) // m * m


def _vmem_limit_bytes():
    """Generation-aware scoped-VMEM limit (leaves headroom, capped at 100 MiB)."""
    cap = 64 * 1024 * 1024
    try:
        info = pltpu.get_tpu_info()
        cap = int(getattr(info, "vmem_capacity_bytes", cap))
    except Exception:
        pass
    return max(32 * 1024 * 1024, min((cap * 3) // 4, 100 * 1024 * 1024))


def _double_conv_kernel(x_ref, w1_ref, b1_ref, w2_ref, b2_ref, mask_ref,
                        o_ref, mid_ref,
                        *, Cp_in, Cp_out, L, Wp, X_LEAD, M_LEAD, M_TAIL,
                        slope):
    # x_ref    : (Cp_in, X_LT)   bf16 flat zero-padded image (+2 slack rows
    #                            top/bottom) for one batch element
    # w*_ref   : (9, Cp_out, C)  bf16 BN-scale-folded per-tap weight matrices
    # b*_ref   : (Cp_out, 1)     f32 folded BN shifts
    # mask_ref : (1, L)          f32, 1 inside the image, 0 on the 1-px border
    # o_ref    : (Cp_out, L)     f32 flat padded output (border lanes dropped)
    # mid_ref  : (Cp_out, MID_LT) bf16 conv1 output staged as conv2 input

    # The lead/tail slack strips of the staging buffer are never dirtied, so
    # zero them only on the first grid step.
    @pl.when(pl.program_id(0) == 0)
    def _zero_slack():
        mid_ref[:, 0:M_LEAD] = jnp.zeros((Cp_out, M_LEAD), jnp.bfloat16)
        mid_ref[:, M_LEAD + L:M_LEAD + L + M_TAIL] = jnp.zeros(
            (Cp_out, M_TAIL), jnp.bfloat16)

    mask = mask_ref[...]                                   # (1, L)

    def conv_bn_lrelu(buf, lead, w_ref, shift_ref):
        # buf: ref (C, LT) bf16 flat zero-padded image, row stride Wp, image
        # interior at lanes [lead, lead+L).  Each 3x3 tap is a constant lane
        # offset, so the conv is 9 accumulating MXU matmuls (no im2col patch).
        shift = shift_ref[...]                             # (Cp_out, 1) f32
        acc = jnp.broadcast_to(shift, (Cp_out, L))         # folded BN shift
        for t in range(9):
            dy, dx = t // 3, t % 3
            start = lead + (dy - 1) * Wp + (dx - 1)        # static lane offset
            acc = acc + jnp.dot(w_ref[t], buf[:, start:start + L],
                                preferred_element_type=jnp.float32)
        return jnp.maximum(acc, slope * acc)               # LeakyReLU (slope<1)

    # conv1 (BN scale pre-folded into w1).  The mask re-zeroes the 1-px border
    # so the intermediate is a valid zero-padded input image for conv2.
    a1 = conv_bn_lrelu(x_ref, X_LEAD, w1_ref, b1_ref) * mask
    mid_ref[:, M_LEAD:M_LEAD + L] = a1.astype(jnp.bfloat16)

    # conv2.  Border lanes of the output are garbage; the wrapper slices them.
    a2 = conv_bn_lrelu(mid_ref, M_LEAD, w2_ref, b2_ref)
    o_ref[...] = a2.astype(o_ref.dtype)


def double_conv_pallas(x_nchw, w1, bn1, w2, bn2, *, slope=0.01, eps=1e-5):
    """x_nchw: (N, C_in, H, W) f32. w*: (C_out, C_in, 3, 3) PyTorch OIHW layout.
    bn*: dict with gamma, beta, mean, var of shape (C_out,) (eval-mode)."""
    N, C_in, H, W = x_nchw.shape
    C_out = w1.shape[0]
    Hp, Wp = H + 2, W + 2
    L = Hp * Wp                                    # flat padded spatial size
    Cp_in = _round_up(C_in, 16)                    # bf16 sublane-tile channels
    Cp_out = _round_up(C_out, 16)

    # Input flat buffer: 2 zero slack rows above/below the conv-padded image,
    # so every 3x3 tap window [start, start+L) is in bounds.  Image interior
    # starts at flat offset X_LEAD = 2*Wp.
    X_LEAD = 2 * Wp
    X_LT = (H + 6) * Wp
    # Staging buffer: lane-aligned lead slack for the interior store.
    M_LEAD = _round_up(Wp + 1, 128)
    M_TAIL = Wp + 1
    MID_LT = M_LEAD + L + M_TAIL

    # Fold the BN scale into the conv weights; build per-tap (Cp_out, Cp_in)
    # bf16 matrices stacked on a leading tap axis (zero-cost slicing in-kernel).
    def fold(w, bn, cin, cp_in):
        scale = bn["gamma"] / jnp.sqrt(bn["var"] + eps)             # (C_out,)
        shift = bn["beta"] - bn["mean"] * scale                     # (C_out,)
        ws = w * scale[:, None, None, None]                         # (C_out, cin, 3, 3)
        wt = jnp.transpose(ws, (2, 3, 0, 1)).reshape(9, C_out, cin)  # (9, C_out, cin)
        wt = jnp.pad(wt, ((0, 0), (0, Cp_out - C_out), (0, cp_in - cin)))
        shift_p = jnp.pad(shift, (0, Cp_out - C_out)).reshape(Cp_out, 1)
        return wt.astype(jnp.bfloat16), shift_p.astype(jnp.float32)

    w1m, b1v = fold(w1, bn1, C_in, Cp_in)
    w2m, b2v = fold(w2, bn2, C_out, Cp_out)

    # Single pad, in bf16: channels -> Cp_in, rows (3,3) = 1-px conv pad plus
    # 2 slack rows each side, cols (1,1) = conv pad.  Then flatten spatial.
    xp = jnp.pad(x_nchw.astype(jnp.bfloat16),
                 ((0, 0), (0, Cp_in - C_in), (3, 3), (1, 1)))
    xf = xp.reshape(N, Cp_in, X_LT)

    # Interior mask over the flat conv-padded image (1 inside, 0 on border).
    row = jnp.arange(Hp)
    col = jnp.arange(Wp)
    m2 = ((row[:, None] >= 1) & (row[:, None] <= H) &
          (col[None, :] >= 1) & (col[None, :] <= W)).astype(jnp.float32)
    mask = m2.reshape(1, L)

    kernel = functools.partial(
        _double_conv_kernel, Cp_in=Cp_in, Cp_out=Cp_out, L=L, Wp=Wp,
        X_LEAD=X_LEAD, M_LEAD=M_LEAD, M_TAIL=M_TAIL, slope=slope)

    out_flat = pl.pallas_call(
        kernel,
        out_shape=jax.ShapeDtypeStruct((N, Cp_out, L), jnp.float32),
        grid_spec=pltpu.PrefetchScalarGridSpec(
            num_scalar_prefetch=0,
            grid=(N,),
            in_specs=[
                pl.BlockSpec((None, Cp_in, X_LT), lambda n: (n, 0, 0)),
                pl.BlockSpec((9, Cp_out, Cp_in), lambda n: (0, 0, 0)),
                pl.BlockSpec((Cp_out, 1), lambda n: (0, 0)),
                pl.BlockSpec((9, Cp_out, Cp_out), lambda n: (0, 0, 0)),
                pl.BlockSpec((Cp_out, 1), lambda n: (0, 0)),
                pl.BlockSpec((1, L), lambda n: (0, 0)),
            ],
            out_specs=pl.BlockSpec((None, Cp_out, L), lambda n: (n, 0, 0)),
            scratch_shapes=[
                pltpu.VMEM((Cp_out, MID_LT), jnp.bfloat16),  # conv1->conv2 staging
            ],
        ),
        compiler_params=pltpu.CompilerParams(
            dimension_semantics=("parallel",),
            vmem_limit_bytes=_vmem_limit_bytes()),
    )(xf, w1m, b1v, w2m, b2v, mask)

    # (N, Cp_out, L) -> (N, C_out, H, W): drop channel padding and the 1-px
    # spatial border (which carries discarded garbage lanes).
    out = out_flat.reshape(N, Cp_out, Hp, Wp)[:, :C_out, 1:H + 1, 1:W + 1]
    return out


def _reference(x_nchw, w1, bn1, w2, bn2, slope=0.01, eps=1e-5):
    def block(x, w, bn):
        y = jax.lax.conv_general_dilated(
            x, w, window_strides=(1, 1), padding=((1, 1), (1, 1)),
            dimension_numbers=("NCHW", "OIHW", "NCHW"))
        scale = bn["gamma"] / jnp.sqrt(bn["var"] + eps)
        shift = bn["beta"] - bn["mean"] * scale
        y = y * scale[None, :, None, None] + shift[None, :, None, None]
        return jnp.where(y >= 0, y, slope * y)
    return block(block(x_nchw, w1, bn1), w2, bn2)


if __name__ == "__main__":
    key = jax.random.PRNGKey(0)
    N, C_in, C_out, H, W = 2, 4, 8, 16, 16

    k = jax.random.split(key, 10)
    x = jax.random.normal(k[0], (N, C_in, H, W), jnp.float32)
    w1 = 0.1 * jax.random.normal(k[1], (C_out, C_in, 3, 3), jnp.float32)
    w2 = 0.1 * jax.random.normal(k[2], (C_out, C_out, 3, 3), jnp.float32)
    bn1 = dict(
        gamma=1.0 + 0.1 * jax.random.normal(k[3], (C_out,), jnp.float32),
        beta=0.1 * jax.random.normal(k[4], (C_out,), jnp.float32),
        mean=0.05 * jax.random.normal(k[5], (C_out,), jnp.float32),
        var=1.0 + 0.1 * jax.random.uniform(k[6], (C_out,), jnp.float32),
    )
    bn2 = dict(
        gamma=1.0 + 0.1 * jax.random.normal(k[7], (C_out,), jnp.float32),
        beta=0.1 * jax.random.normal(k[8], (C_out,), jnp.float32),
        mean=0.05 * jax.random.normal(k[9], (C_out,), jnp.float32),
        var=jnp.full((C_out,), 1.2, jnp.float32),
    )

    out = double_conv_pallas(x, w1, bn1, w2, bn2)
    out = jax.block_until_ready(out)

    ref = _reference(x, w1, bn1, w2, bn2)
    assert out.shape == (N, C_out, H, W)
    # bf16 weights/activations vs. f32 reference -> bf16-aware tolerance.
    assert jnp.allclose(out, ref, atol=2e-2, rtol=2e-2), (
        "mismatch vs reference, max err = %f"
        % float(jnp.max(jnp.abs(out - ref))))
    print("KERNEL_OK")
</pallas_src>

<mosaic_0001>
module attributes {stable_mosaic.version = 11 : i64} {
  func.func @_double_conv_kernel(%arg0: i32, %arg1: memref<1x16x396xbf16, #tpu.memory_space<vmem>>, %arg2: memref<9x16x16xbf16, #tpu.memory_space<vmem>>, %arg3: memref<16x1xf32, #tpu.memory_space<vmem>>, %arg4: memref<9x16x16xbf16, #tpu.memory_space<vmem>>, %arg5: memref<16x1xf32, #tpu.memory_space<vmem>>, %arg6: memref<1x324xf32, #tpu.memory_space<vmem>>, %arg7: memref<1x16x324xf32, #tpu.memory_space<vmem>>, %arg8: memref<16x471xbf16, #tpu.memory_space<vmem>>) attributes {dimension_semantics = [#tpu.dimension_semantics<parallel>], iteration_bounds = array<i64: 2>, scalar_prefetch = 0 : i64, scratch_operands = 1 : i64, tpu.core_type = #tpu.core_type<tc>, window_params = [{transform_indices = @transform_0, window_bounds = array<i64: 1, 16, 396>}, {pipeline_mode = #tpu.pipeline_mode<synchronous>, transform_indices = @transform_1, window_bounds = array<i64: 9, 16, 16>}, {pipeline_mode = #tpu.pipeline_mode<synchronous>, transform_indices = @transform_2, window_bounds = array<i64: 16, 1>}, {pipeline_mode = #tpu.pipeline_mode<synchronous>, transform_indices = @transform_3, window_bounds = array<i64: 9, 16, 16>}, {pipeline_mode = #tpu.pipeline_mode<synchronous>, transform_indices = @transform_4, window_bounds = array<i64: 16, 1>}, {pipeline_mode = #tpu.pipeline_mode<synchronous>, transform_indices = @transform_5, window_bounds = array<i64: 1, 324>}, {transform_indices = @transform_6, window_bounds = array<i64: 1, 16, 324>}]} {
    %c0_i32 = arith.constant 0 : i32
    %0 = arith.cmpi eq, %arg0, %c0_i32 : i32
    %1 = arith.extui %0 : i1 to i32
    %c0_i32_0 = arith.constant 0 : i32
    %2 = arith.cmpi ne, %1, %c0_i32_0 : i32
    scf.if %2 {
      %cst_103 = arith.constant 0.000000e+00 : bf16
      %122 = vector.broadcast %cst_103 : bf16 to vector<16x128xbf16>
      %c0_104 = arith.constant 0 : index
      %c0_105 = arith.constant 0 : index
      %123 = vector.load %arg8[%c0_104, %c0_105] : memref<16x471xbf16, #tpu.memory_space<vmem>>, vector<16x128xbf16>
      tpu.vector_store %arg8[%c0_104, %c0_105], %122 {strides = array<i32>} : memref<16x471xbf16, #tpu.memory_space<vmem>>, vector<16x128xbf16>,
      %cst_106 = arith.constant 0.000000e+00 : bf16
      %124 = vector.broadcast %cst_106 : bf16 to vector<16x19xbf16>
      %c0_107 = arith.constant 0 : index
      %c452 = arith.constant 452 : index
      %125 = vector.load %arg8[%c0_107, %c452] : memref<16x471xbf16, #tpu.memory_space<vmem>>, vector<16x19xbf16>
      tpu.vector_store %arg8[%c0_107, %c452], %124 {strides = array<i32>} : memref<16x471xbf16, #tpu.memory_space<vmem>>, vector<16x19xbf16>,
    } else {
    }
    %c0 = arith.constant 0 : index
    %c0_1 = arith.constant 0 : index
    %3 = vector.load %arg6[%c0, %c0_1] : memref<1x324xf32, #tpu.memory_space<vmem>>, vector<1x324xf32>
    %c0_2 = arith.constant 0 : index
    %c0_3 = arith.constant 0 : index
    %4 = vector.load %arg3[%c0_2, %c0_3] : memref<16x1xf32, #tpu.memory_space<vmem>>, vector<16x1xf32>
    %5 = vector.shape_cast %4 : vector<16x1xf32> to vector<16x1xf32>
    %6 = vector.broadcast %5 : vector<16x1xf32> to vector<16x324xf32>
    %c0_4 = arith.constant 0 : index
    %c0_5 = arith.constant 0 : index
    %c0_6 = arith.constant 0 : index
    %7 = vector.load %arg2[%c0_4, %c0_5, %c0_6] : memref<9x16x16xbf16, #tpu.memory_space<vmem>>, vector<1x16x16xbf16>
    %8 = vector.shape_cast %7 : vector<1x16x16xbf16> to vector<16x16xbf16>
    %c0_7 = arith.constant 0 : index
    %c0_8 = arith.constant 0 : index
    %c17 = arith.constant 17 : index
    %9 = vector.load %arg1[%c0_7, %c0_8, %c17] : memref<1x16x396xbf16, #tpu.memory_space<vmem>>, vector<1x16x324xbf16>
    %10 = vector.shape_cast %9 : vector<1x16x324xbf16> to vector<16x324xbf16>
    %cst = arith.constant dense<0.000000e+00> : vector<16x324xf32>
    %11 = tpu.matmul %8, %10, %cst {dimension_numbers = #tpu.dot_dimension_numbers<[1], [0], [0], [1], [0, 0, 1, 1], [], []>} : vector<16x16xbf16>, vector<16x324xbf16>, vector<16x324xf32> -> vector<16x324xf32>
    %12 = arith.addf %6, %11 : vector<16x324xf32>
    %c1 = arith.constant 1 : index
    %c0_9 = arith.constant 0 : index
    %c0_10 = arith.constant 0 : index
    %13 = vector.load %arg2[%c1, %c0_9, %c0_10] : memref<9x16x16xbf16, #tpu.memory_space<vmem>>, vector<1x16x16xbf16>
    %14 = vector.shape_cast %13 : vector<1x16x16xbf16> to vector<16x16xbf16>
    %c0_11 = arith.constant 0 : index
    %c0_12 = arith.constant 0 : index
    %c18 = arith.constant 18 : index
    %15 = vector.load %arg1[%c0_11, %c0_12, %c18] : memref<1x16x396xbf16, #tpu.memory_space<vmem>>, vector<1x16x324xbf16>
    %16 = vector.shape_cast %15 : vector<1x16x324xbf16> to vector<16x324xbf16>
    %cst_13 = arith.constant dense<0.000000e+00> : vector<16x324xf32>
    %17 = tpu.matmul %14, %16, %cst_13 {dimension_numbers = #tpu.dot_dimension_numbers<[1], [0], [0], [1], [0, 0, 1, 1], [], []>} : vector<16x16xbf16>, vector<16x324xbf16>, vector<16x324xf32> -> vector<16x324xf32>
    %18 = arith.addf %12, %17 : vector<16x324xf32>
    %c2 = arith.constant 2 : index
    %c0_14 = arith.constant 0 : index
    %c0_15 = arith.constant 0 : index
    %19 = vector.load %arg2[%c2, %c0_14, %c0_15] : memref<9x16x16xbf16, #tpu.memory_space<vmem>>, vector<1x16x16xbf16>
    %20 = vector.shape_cast %19 : vector<1x16x16xbf16> to vector<16x16xbf16>
    %c0_16 = arith.constant 0 : index
    %c0_17 = arith.constant 0 : index
    %c19 = arith.constant 19 : index
    %21 = vector.load %arg1[%c0_16, %c0_17, %c19] : memref<1x16x396xbf16, #tpu.memory_space<vmem>>, vector<1x16x324xbf16>
    %22 = vector.shape_cast %21 : vector<1x16x324xbf16> to vector<16x324xbf16>
    %cst_18 = arith.constant dense<0.000000e+00> : vector<16x324xf32>
    %23 = tpu.matmul %20, %22, %cst_18 {dimension_numbers = #tpu.dot_dimension_numbers<[1], [0], [0], [1], [0, 0, 1, 1], [], []>} : vector<16x16xbf16>, vector<16x324xbf16>, vector<16x324xf32> -> vector<16x324xf32>
    %24 = arith.addf %18, %23 : vector<16x324xf32>
    %c3 = arith.constant 3 : index
    %c0_19 = arith.constant 0 : index
    %c0_20 = arith.constant 0 : index
    %25 = vector.load %arg2[%c3, %c0_19, %c0_20] : memref<9x16x16xbf16, #tpu.memory_space<vmem>>, vector<1x16x16xbf16>
    %26 = vector.shape_cast %25 : vector<1x16x16xbf16> to vector<16x16xbf16>
    %c0_21 = arith.constant 0 : index
    %c0_22 = arith.constant 0 : index
    %c35 = arith.constant 35 : index
    %27 = vector.load %arg1[%c0_21, %c0_22, %c35] : memref<1x16x396xbf16, #tpu.memory_space<vmem>>, vector<1x16x324xbf16>
    %28 = vector.shape_cast %27 : vector<1x16x324xbf16> to vector<16x324xbf16>
    %cst_23 = arith.constant dense<0.000000e+00> : vector<16x324xf32>
    %29 = tpu.matmul %26, %28, %cst_23 {dimension_numbers = #tpu.dot_dimension_numbers<[1], [0], [0], [1], [0, 0, 1, 1], [], []>} : vector<16x16xbf16>, vector<16x324xbf16>, vector<16x324xf32> -> vector<16x324xf32>
    %30 = arith.addf %24, %29 : vector<16x324xf32>
    %c4 = arith.constant 4 : index
    %c0_24 = arith.constant 0 : index
    %c0_25 = arith.constant 0 : index
    %31 = vector.load %arg2[%c4, %c0_24, %c0_25] : memref<9x16x16xbf16, #tpu.memory_space<vmem>>, vector<1x16x16xbf16>
    %32 = vector.shape_cast %31 : vector<1x16x16xbf16> to vector<16x16xbf16>
    %c0_26 = arith.constant 0 : index
    %c0_27 = arith.constant 0 : index
    %c36 = arith.constant 36 : index
    %33 = vector.load %arg1[%c0_26, %c0_27, %c36] : memref<1x16x396xbf16, #tpu.memory_space<vmem>>, vector<1x16x324xbf16>
    %34 = vector.shape_cast %33 : vector<1x16x324xbf16> to vector<16x324xbf16>
    %cst_28 = arith.constant dense<0.000000e+00> : vector<16x324xf32>
    %35 = tpu.matmul %32, %34, %cst_28 {dimension_numbers = #tpu.dot_dimension_numbers<[1], [0], [0], [1], [0, 0, 1, 1], [], []>} : vector<16x16xbf16>, vector<16x324xbf16>, vector<16x324xf32> -> vector<16x324xf32>
    %36 = arith.addf %30, %35 : vector<16x324xf32>
    %c5 = arith.constant 5 : index
    %c0_29 = arith.constant 0 : index
    %c0_30 = arith.constant 0 : index
    %37 = vector.load %arg2[%c5, %c0_29, %c0_30] : memref<9x16x16xbf16, #tpu.memory_space<vmem>>, vector<1x16x16xbf16>
    %38 = vector.shape_cast %37 : vector<1x16x16xbf16> to vector<16x16xbf16>
    %c0_31 = arith.constant 0 : index
    %c0_32 = arith.constant 0 : index
    %c37 = arith.constant 37 : index
    %39 = vector.load %arg1[%c0_31, %c0_32, %c37] : memref<1x16x396xbf16, #tpu.memory_space<vmem>>, vector<1x16x324xbf16>
    %40 = vector.shape_cast %39 : vector<1x16x324xbf16> to vector<16x324xbf16>
    %cst_33 = arith.constant dense<0.000000e+00> : vector<16x324xf32>
    %41 = tpu.matmul %38, %40, %cst_33 {dimension_numbers = #tpu.dot_dimension_numbers<[1], [0], [0], [1], [0, 0, 1, 1], [], []>} : vector<16x16xbf16>, vector<16x324xbf16>, vector<16x324xf32> -> vector<16x324xf32>
    %42 = arith.addf %36, %41 : vector<16x324xf32>
    %c6 = arith.constant 6 : index
    %c0_34 = arith.constant 0 : index
    %c0_35 = arith.constant 0 : index
    %43 = vector.load %arg2[%c6, %c0_34, %c0_35] : memref<9x16x16xbf16, #tpu.memory_space<vmem>>, vector<1x16x16xbf16>
    %44 = vector.shape_cast %43 : vector<1x16x16xbf16> to vector<16x16xbf16>
    %c0_36 = arith.constant 0 : index
    %c0_37 = arith.constant 0 : index
    %c53 = arith.constant 53 : index
    %45 = vector.load %arg1[%c0_36, %c0_37, %c53] : memref<1x16x396xbf16, #tpu.memory_space<vmem>>, vector<1x16x324xbf16>
    %46 = vector.shape_cast %45 : vector<1x16x324xbf16> to vector<16x324xbf16>
    %cst_38 = arith.constant dense<0.000000e+00> : vector<16x324xf32>
    %47 = tpu.matmul %44, %46, %cst_38 {dimension_numbers = #tpu.dot_dimension_numbers<[1], [0], [0], [1], [0, 0, 1, 1], [], []>} : vector<16x16xbf16>, vector<16x324xbf16>, vector<16x324xf32> -> vector<16x324xf32>
    %48 = arith.addf %42, %47 : vector<16x324xf32>
    %c7 = arith.constant 7 : index
    %c0_39 = arith.constant 0 : index
    %c0_40 = arith.constant 0 : index
    %49 = vector.load %arg2[%c7, %c0_39, %c0_40] : memref<9x16x16xbf16, #tpu.memory_space<vmem>>, vector<1x16x16xbf16>
    %50 = vector.shape_cast %49 : vector<1x16x16xbf16> to vector<16x16xbf16>
    %c0_41 = arith.constant 0 : index
    %c0_42 = arith.constant 0 : index
    %c54 = arith.constant 54 : index
    %51 = vector.load %arg1[%c0_41, %c0_42, %c54] : memref<1x16x396xbf16, #tpu.memory_space<vmem>>, vector<1x16x324xbf16>
    %52 = vector.shape_cast %51 : vector<1x16x324xbf16> to vector<16x324xbf16>
    %cst_43 = arith.constant dense<0.000000e+00> : vector<16x324xf32>
    %53 = tpu.matmul %50, %52, %cst_43 {dimension_numbers = #tpu.dot_dimension_numbers<[1], [0], [0], [1], [0, 0, 1, 1], [], []>} : vector<16x16xbf16>, vector<16x324xbf16>, vector<16x324xf32> -> vector<16x324xf32>
    %54 = arith.addf %48, %53 : vector<16x324xf32>
    %c8 = arith.constant 8 : index
    %c0_44 = arith.constant 0 : index
    %c0_45 = arith.constant 0 : index
    %55 = vector.load %arg2[%c8, %c0_44, %c0_45] : memref<9x16x16xbf16, #tpu.memory_space<vmem>>, vector<1x16x16xbf16>
    %56 = vector.shape_cast %55 : vector<1x16x16xbf16> to vector<16x16xbf16>
    %c0_46 = arith.constant 0 : index
    %c0_47 = arith.constant 0 : index
    %c55 = arith.constant 55 : index
    %57 = vector.load %arg1[%c0_46, %c0_47, %c55] : memref<1x16x396xbf16, #tpu.memory_space<vmem>>, vector<1x16x324xbf16>
    %58 = vector.shape_cast %57 : vector<1x16x324xbf16> to vector<16x324xbf16>
    %cst_48 = arith.constant dense<0.000000e+00> : vector<16x324xf32>
    %59 = tpu.matmul %56, %58, %cst_48 {dimension_numbers = #tpu.dot_dimension_numbers<[1], [0], [0], [1], [0, 0, 1, 1], [], []>} : vector<16x16xbf16>, vector<16x324xbf16>, vector<16x324xf32> -> vector<16x324xf32>
    %60 = arith.addf %54, %59 : vector<16x324xf32>
    %cst_49 = arith.constant 0.00999999977 : f32
    %61 = vector.broadcast %cst_49 : f32 to vector<16x324xf32>
    %62 = arith.mulf %61, %60 : vector<16x324xf32>
    %63 = arith.maximumf %60, %62 : vector<16x324xf32>
    %64 = vector.broadcast %3 : vector<1x324xf32> to vector<16x324xf32>
    %65 = arith.mulf %63, %64 : vector<16x324xf32>
    %66 = arith.truncf %65 : vector<16x324xf32> to vector<16x324xbf16>
    %c0_50 = arith.constant 0 : index
    %c128 = arith.constant 128 : index
    %67 = vector.load %arg8[%c0_50, %c128] : memref<16x471xbf16, #tpu.memory_space<vmem>>, vector<16x324xbf16>
    tpu.vector_store %arg8[%c0_50, %c128], %66 {strides = array<i32>} : memref<16x471xbf16, #tpu.memory_space<vmem>>, vector<16x324xbf16>,
    %c0_51 = arith.constant 0 : index
    %c0_52 = arith.constant 0 : index
    %68 = vector.load %arg5[%c0_51, %c0_52] : memref<16x1xf32, #tpu.memory_space<vmem>>, vector<16x1xf32>
    %69 = vector.shape_cast %68 : vector<16x1xf32> to vector<16x1xf32>
    %70 = vector.broadcast %69 : vector<16x1xf32> to vector<16x324xf32>
    %c0_53 = arith.constant 0 : index
    %c0_54 = arith.constant 0 : index
    %c0_55 = arith.constant 0 : index
    %71 = vector.load %arg4[%c0_53, %c0_54, %c0_55] : memref<9x16x16xbf16, #tpu.memory_space<vmem>>, vector<1x16x16xbf16>
    %72 = vector.shape_cast %71 : vector<1x16x16xbf16> to vector<16x16xbf16>
    %c0_56 = arith.constant 0 : index
    %c109 = arith.constant 109 : index
    %73 = vector.load %arg8[%c0_56, %c109] : memref<16x471xbf16, #tpu.memory_space<vmem>>, vector<16x324xbf16>
    %cst_57 = arith.constant dense<0.000000e+00> : vector<16x324xf32>
    %74 = tpu.matmul %72, %73, %cst_57 {dimension_numbers = #tpu.dot_dimension_numbers<[1], [0], [0], [1], [0, 0, 1, 1], [], []>} : vector<16x16xbf16>, vector<16x324xbf16>, vector<16x324xf32> -> vector<16x324xf32>
    %75 = arith.addf %70, %74 : vector<16x324xf32>
    %c1_58 = arith.constant 1 : index
    %c0_59 = arith.constant 0 : index
    %c0_60 = arith.constant 0 : index
    %76 = vector.load %arg4[%c1_58, %c0_59, %c0_60] : memref<9x16x16xbf16, #tpu.memory_space<vmem>>, vector<1x16x16xbf16>
    %77 = vector.shape_cast %76 : vector<1x16x16xbf16> to vector<16x16xbf16>
    %c0_61 = arith.constant 0 : index
    %c110 = arith.constant 110 : index
    %78 = vector.load %arg8[%c0_61, %c110] : memref<16x471xbf16, #tpu.memory_space<vmem>>, vector<16x324xbf16>
    %cst_62 = arith.constant dense<0.000000e+00> : vector<16x324xf32>
    %79 = tpu.matmul %77, %78, %cst_62 {dimension_numbers = #tpu.dot_dimension_numbers<[1], [0], [0], [1], [0, 0, 1, 1], [], []>} : vector<16x16xbf16>, vector<16x324xbf16>, vector<16x324xf32> -> vector<16x324xf32>
    %80 = arith.addf %75, %79 : vector<16x324xf32>
    %c2_63 = arith.constant 2 : index
    %c0_64 = arith.constant 0 : index
    %c0_65 = arith.constant 0 : index
    %81 = vector.load %arg4[%c2_63, %c0_64, %c0_65] : memref<9x16x16xbf16, #tpu.memory_space<vmem>>, vector<1x16x16xbf16>
    %82 = vector.shape_cast %81 : vector<1x16x16xbf16> to vector<16x16xbf16>
    %c0_66 = arith.constant 0 : index
    %c111 = arith.constant 111 : index
    %83 = vector.load %arg8[%c0_66, %c111] : memref<16x471xbf16, #tpu.memory_space<vmem>>, vector<16x324xbf16>
    %cst_67 = arith.constant dense<0.000000e+00> : vector<16x324xf32>
    %84 = tpu.matmul %82, %83, %cst_67 {dimension_numbers = #tpu.dot_dimension_numbers<[1], [0], [0], [1], [0, 0, 1, 1], [], []>} : vector<16x16xbf16>, vector<16x324xbf16>, vector<16x324xf32> -> vector<16x324xf32>
    %85 = arith.addf %80, %84 : vector<16x324xf32>
    %c3_68 = arith.constant 3 : index
    %c0_69 = arith.constant 0 : index
    %c0_70 = arith.constant 0 : index
    %86 = vector.load %arg4[%c3_68, %c0_69, %c0_70] : memref<9x16x16xbf16, #tpu.memory_space<vmem>>, vector<1x16x16xbf16>
    %87 = vector.shape_cast %86 : vector<1x16x16xbf16> to vector<16x16xbf16>
    %c0_71 = arith.constant 0 : index
    %c127 = arith.constant 127 : index
    %88 = vector.load %arg8[%c0_71, %c127] : memref<16x471xbf16, #tpu.memory_space<vmem>>, vector<16x324xbf16>
    %cst_72 = arith.constant dense<0.000000e+00> : vector<16x324xf32>
    %89 = tpu.matmul %87, %88, %cst_72 {dimension_numbers = #tpu.dot_dimension_numbers<[1], [0], [0], [1], [0, 0, 1, 1], [], []>} : vector<16x16xbf16>, vector<16x324xbf16>, vector<16x324xf32> -> vector<16x324xf32>
    %90 = arith.addf %85, %89 : vector<16x324xf32>
    %c4_73 = arith.constant 4 : index
    %c0_74 = arith.constant 0 : index
    %c0_75 = arith.constant 0 : index
    %91 = vector.load %arg4[%c4_73, %c0_74, %c0_75] : memref<9x16x16xbf16, #tpu.memory_space<vmem>>, vector<1x16x16xbf16>
    %92 = vector.shape_cast %91 : vector<1x16x16xbf16> to vector<16x16xbf16>
    %c0_76 = arith.constant 0 : index
    %c128_77 = arith.constant 128 : index
    %93 = vector.load %arg8[%c0_76, %c128_77] : memref<16x471xbf16, #tpu.memory_space<vmem>>, vector<16x324xbf16>
    %cst_78 = arith.constant dense<0.000000e+00> : vector<16x324xf32>
    %94 = tpu.matmul %92, %93, %cst_78 {dimension_numbers = #tpu.dot_dimension_numbers<[1], [0], [0], [1], [0, 0, 1, 1], [], []>} : vector<16x16xbf16>, vector<16x324xbf16>, vector<16x324xf32> -> vector<16x324xf32>
    %95 = arith.addf %90, %94 : vector<16x324xf32>
    %c5_79 = arith.constant 5 : index
    %c0_80 = arith.constant 0 : index
    %c0_81 = arith.constant 0 : index
    %96 = vector.load %arg4[%c5_79, %c0_80, %c0_81] : memref<9x16x16xbf16, #tpu.memory_space<vmem>>, vector<1x16x16xbf16>
    %97 = vector.shape_cast %96 : vector<1x16x16xbf16> to vector<16x16xbf16>
    %c0_82 = arith.constant 0 : index
    %c129 = arith.constant 129 : index
    %98 = vector.load %arg8[%c0_82, %c129] : memref<16x471xbf16, #tpu.memory_space<vmem>>, vector<16x324xbf16>
    %cst_83 = arith.constant dense<0.000000e+00> : vector<16x324xf32>
    %99 = tpu.matmul %97, %98, %cst_83 {dimension_numbers = #tpu.dot_dimension_numbers<[1], [0], [0], [1], [0, 0, 1, 1], [], []>} : vector<16x16xbf16>, vector<16x324xbf16>, vector<16x324xf32> -> vector<16x324xf32>
    %100 = arith.addf %95, %99 : vector<16x324xf32>
    %c6_84 = arith.constant 6 : index
    %c0_85 = arith.constant 0 : index
    %c0_86 = arith.constant 0 : index
    %101 = vector.load %arg4[%c6_84, %c0_85, %c0_86] : memref<9x16x16xbf16, #tpu.memory_space<vmem>>, vector<1x16x16xbf16>
    %102 = vector.shape_cast %101 : vector<1x16x16xbf16> to vector<16x16xbf16>
    %c0_87 = arith.constant 0 : index
    %c145 = arith.constant 145 : index
    %103 = vector.load %arg8[%c0_87, %c145] : memref<16x471xbf16, #tpu.memory_space<vmem>>, vector<16x324xbf16>
    %cst_88 = arith.constant dense<0.000000e+00> : vector<16x324xf32>
    %104 = tpu.matmul %102, %103, %cst_88 {dimension_numbers = #tpu.dot_dimension_numbers<[1], [0], [0], [1], [0, 0, 1, 1], [], []>} : vector<16x16xbf16>, vector<16x324xbf16>, vector<16x324xf32> -> vector<16x324xf32>
    %105 = arith.addf %100, %104 : vector<16x324xf32>
    %c7_89 = arith.constant 7 : index
    %c0_90 = arith.constant 0 : index
    %c0_91 = arith.constant 0 : index
    %106 = vector.load %arg4[%c7_89, %c0_90, %c0_91] : memref<9x16x16xbf16, #tpu.memory_space<vmem>>, vector<1x16x16xbf16>
    %107 = vector.shape_cast %106 : vector<1x16x16xbf16> to vector<16x16xbf16>
    %c0_92 = arith.constant 0 : index
    %c146 = arith.constant 146 : index
    %108 = vector.load %arg8[%c0_92, %c146] : memref<16x471xbf16, #tpu.memory_space<vmem>>, vector<16x324xbf16>
    %cst_93 = arith.constant dense<0.000000e+00> : vector<16x324xf32>
    %109 = tpu.matmul %107, %108, %cst_93 {dimension_numbers = #tpu.dot_dimension_numbers<[1], [0], [0], [1], [0, 0, 1, 1], [], []>} : vector<16x16xbf16>, vector<16x324xbf16>, vector<16x324xf32> -> vector<16x324xf32>
    %110 = arith.addf %105, %109 : vector<16x324xf32>
    %c8_94 = arith.constant 8 : index
    %c0_95 = arith.constant 0 : index
    %c0_96 = arith.constant 0 : index
    %111 = vector.load %arg4[%c8_94, %c0_95, %c0_96] : memref<9x16x16xbf16, #tpu.memory_space<vmem>>, vector<1x16x16xbf16>
    %112 = vector.shape_cast %111 : vector<1x16x16xbf16> to vector<16x16xbf16>
    %c0_97 = arith.constant 0 : index
    %c147 = arith.constant 147 : index
    %113 = vector.load %arg8[%c0_97, %c147] : memref<16x471xbf16, #tpu.memory_space<vmem>>, vector<16x324xbf16>
    %cst_98 = arith.constant dense<0.000000e+00> : vector<16x324xf32>
    %114 = tpu.matmul %112, %113, %cst_98 {dimension_numbers = #tpu.dot_dimension_numbers<[1], [0], [0], [1], [0, 0, 1, 1], [], []>} : vector<16x16xbf16>, vector<16x324xbf16>, vector<16x324xf32> -> vector<16x324xf32>
    %115 = arith.addf %110, %114 : vector<16x324xf32>
    %cst_99 = arith.constant 0.00999999977 : f32
    %116 = vector.broadcast %cst_99 : f32 to vector<16x324xf32>
    %117 = arith.mulf %116, %115 : vector<16x324xf32>
    %118 = arith.maximumf %115, %117 : vector<16x324xf32>
    %c0_100 = arith.constant 0 : index
    %c0_101 = arith.constant 0 : index
    %c0_102 = arith.constant 0 : index
    %119 = vector.load %arg7[%c0_100, %c0_101, %c0_102] : memref<1x16x324xf32, #tpu.memory_space<vmem>>, vector<1x16x324xf32>
    %120 = vector.shape_cast %119 : vector<1x16x324xf32> to vector<16x324xf32>
    %121 = vector.shape_cast %118 : vector<16x324xf32> to vector<1x16x324xf32>
    tpu.vector_store %arg7[%c0_100, %c0_101, %c0_102], %121 {strides = array<i32>} : memref<1x16x324xf32, #tpu.memory_space<vmem>>, vector<1x16x324xf32>,
    return
  }
  func.func @transform_0(%arg0: i32) -> (i32, i32, i32) {
    %c0_i32 = arith.constant 0 : i32
    %c0_i32_0 = arith.constant 0 : i32
    %c0_i32_1 = arith.constant 0 : i32
    return %arg0, %c0_i32, %c0_i32_0 : i32, i32, i32
  }
  func.func @transform_1(%arg0: i32) -> (i32, i32, i32) {
    %c0_i32 = arith.constant 0 : i32
    %c0_i32_0 = arith.constant 0 : i32
    %c0_i32_1 = arith.constant 0 : i32
    %c0_i32_2 = arith.constant 0 : i32
    return %c0_i32, %c0_i32_0, %c0_i32_1 : i32, i32, i32
  }
  func.func @transform_2(%arg0: i32) -> (i32, i32) {
    %c0_i32 = arith.constant 0 : i32
    %c0_i32_0 = arith.constant 0 : i32
    %c0_i32_1 = arith.constant 0 : i32
    return %c0_i32, %c0_i32_0 : i32, i32
  }
  func.func @transform_3(%arg0: i32) -> (i32, i32, i32) {
    %c0_i32 = arith.constant 0 : i32
    %c0_i32_0 = arith.constant 0 : i32
    %c0_i32_1 = arith.constant 0 : i32
    %c0_i32_2 = arith.constant 0 : i32
    return %c0_i32, %c0_i32_0, %c0_i32_1 : i32, i32, i32
  }
  func.func @transform_4(%arg0: i32) -> (i32, i32) {
    %c0_i32 = arith.constant 0 : i32
    %c0_i32_0 = arith.constant 0 : i32
    %c0_i32_1 = arith.constant 0 : i32
    return %c0_i32, %c0_i32_0 : i32, i32
  }
  func.func @transform_5(%arg0: i32) -> (i32, i32) {
    %c0_i32 = arith.constant 0 : i32
    %c0_i32_0 = arith.constant 0 : i32
    %c0_i32_1 = arith.constant 0 : i32
    return %c0_i32, %c0_i32_0 : i32, i32
  }
  func.func @transform_6(%arg0: i32) -> (i32, i32, i32) {
    %c0_i32 = arith.constant 0 : i32
    %c0_i32_0 = arith.constant 0 : i32
    %c0_i32_1 = arith.constant 0 : i32
    return %arg0, %c0_i32, %c0_i32_0 : i32, i32, i32
  }
}

</mosaic_0001>

<llo_original>
// kernel: tpu_custom_call.1
$region0: #{tpu_custom_call.1}
  #allocation0 [shape = 'u32[]', space=smem, size = 0x4, offset = 0x4, fixed_abs, tag = 'smem constant byte address 0x4 - core index']
  #allocation1 [shape = 'u32[144,128]{1,0:T(1,128)}', space=vmem, size = 0x12000, scoped, tag = 'internal scratch']
  #allocation2 [shape = 'bf16[16,471]{1,0:T(8,128)(2,1)}', space=vmem, size = 0x4000, scoped, tag = 'scratch operand']
  %s0 = inlined_call_operand.hbm [shape: bf16[2,16,396], index: 0, kind: input, shape index: {}]
  %s1 = inlined_call_operand.hbm [shape: bf16[9,16,16], index: 1, kind: input, shape index: {}]
  %s2 = inlined_call_operand.vmem [shape: f32[16,1], index: 2, kind: input, shape index: {}]
  %s3 = inlined_call_operand.hbm [shape: bf16[9,16,16], index: 3, kind: input, shape index: {}]
  %s4 = inlined_call_operand.vmem [shape: f32[16,1], index: 4, kind: input, shape index: {}]
  %s5 = inlined_call_operand.vmem [shape: f32[1,324], index: 5, kind: input, shape index: {}]
  %s6 = inlined_call_operand.hbm [shape: f32[2,16,324], index: 6, kind: output, shape index: {}]
  %s7 = sld [smem:[#allocation0]]
  $region73: #{tpu_custom_call.1} parent=0
    _
  %s9 = ssub.s32 1, %s7
  %s10 = scalar_select 0, %s9, %s7
  $region1: #{tpu_custom_call.1} parent=0
    #allocation3 [shape = 'u8[32768]{0}', space=vmem, size = 0x8000, scoped, tag = 'input window, operand 0']
    #allocation4 [shape = 's32[2]{0}', space=sflag, size = 0x8, scoped, tag = 'scoped memory for tpu_custom_call.1']
    #allocation5 [shape = 's32[2]{0}', space=sflag, size = 0x8, scoped, tag = 'scoped memory for tpu_custom_call.1']
    #allocation6 [shape = 'u8[36864]{0}', space=vmem, size = 0x9000, scoped, tag = 'input window, operand 1, single buffered']
    #allocation7 [shape = 's32[1]{0}', space=sflag, size = 0x4, scoped, tag = 'scoped memory for tpu_custom_call.1']
    #allocation8 [shape = 'u8[36864]{0}', space=vmem, size = 0x9000, scoped, tag = 'input window, operand 3, single buffered']
    #allocation9 [shape = 'u8[49152]{0}', space=vmem, size = 0xc000, scoped, tag = 'output window, operand 0']
    %11 = vsyncpa [#allocation4], 0
    %s12 = scalar_lea.sflag [#allocation4], 1
    %13 = vsyncpa %s12, 0
    %14 = vsyncpa [#allocation7], 0
    %15 = vsyncpa [#allocation5], 0
    %s16 = scalar_lea.sflag [#allocation5], 1
    %17 = vsyncpa %s16, 0
    loop: start=0, step=1, limit=4
    $region2: #{tpu_custom_call.1} parent=1 // loop_pre_header
      _
    $region3: #{tpu_custom_call.1} parent=1 // loop_header
      %s19 = sphi 0, %s23
      %p20 = scmp.ge.s32.totalorder %s19, 4
      %s29 = sphi 0, %s31
      %s32 = sphi 0, %s29
      %s33 = sphi 0, %s32
      %s49 = sphi 0, %s33
      %s53 = sphi 0, %s53
      %s55 = sphi 0, %s53
      %s56 = sphi 0, %s55
      %s70 = sphi 0, %s56
      %s74 = sphi 0, %s74
      %s76 = sphi 0, %s74
      %s77 = sphi 0, %s76
      %s91 = sphi 0, %s77
      %s95 = sphi 0, %s95
      %s97 = sphi 0, %s95
      %s98 = sphi 0, %s97
      %s112 = sphi 0, %s98
      %s116 = sphi 0, %s116
      %s118 = sphi 0, %s116
      %s119 = sphi 0, %s118
      %s133 = sphi 0, %s119
      %s137 = sphi 0, %s137
      %s139 = sphi 0, %s137
      %s140 = sphi 0, %s139
      %s154 = sphi 0, %s140
      %s160 = sphi 0, %s162
      %s163 = sphi 0, %s160
      %s164 = sphi 0, %s163
      %s180 = sphi 0, %s164
    $region4: #{tpu_custom_call.1} parent=1 // loop_header_branch
      %22 = sbr.rel (%p20) target = $region8
    $region5: #{tpu_custom_call.1} parent=1 // loop_body
      %s24 = ssub.s32 %s19, 1
      %s25 = ssub.s32 %s19, 2
      %s26 = sadd.s32 %s19, 1
      %s27 = ssub.s32 %s19, %s26
      %p28 = scmp.eq.s32.totalorder %s27, 0
      %s30 = sadd.s32 %s29, 1
      %s31 = scalar_select %p28, %s29, %s30
      %p34 = pneg %p28
      %p35 = scmp.eq.s32.totalorder %s19, 1
      %p36 = por %p34, %p35
      %p37 = scmp.ne.s32.totalorder %s29, %s32
      %p38 = scmp.eq.s32.totalorder %s19, 0
      %p39 = por %p37, %p38
      %p40 = scmp.ne.s32.totalorder %s29, %s32
      %p41 = scmp.eq.s32.totalorder %s24, 1
      %p42 = por %p40, %p41
      %p43 = scmp.ne.s32.totalorder %s32, %s33
      %p44 = scmp.eq.s32.totalorder %s24, 0
      %p45 = por %p43, %p44
      %p46 = scmp.ne.s32.totalorder %s32, %s33
      %p47 = scmp.eq.s32.totalorder %s25, 1
      %p48 = por %p46, %p47
      %p50 = scmp.ne.s32.totalorder %s33, %s49
      %p51 = scmp.eq.s32.totalorder %s25, 0
      %p52 = por %p50, %p51
      %s54 = sadd.s32 %s53, 1
      %p57 = scmp.eq.s32.totalorder %s19, 1
      %p58 = scmp.ne.s32.totalorder %s53, %s55
      %p59 = scmp.eq.s32.totalorder %s19, 0
      %p60 = por %p58, %p59
      %p61 = scmp.ne.s32.totalorder %s53, %s55
      %p62 = scmp.eq.s32.totalorder %s24, 1
      %p63 = por %p61, %p62
      %p64 = scmp.ne.s32.totalorder %s55, %s56
      %p65 = scmp.eq.s32.totalorder %s24, 0
      %p66 = por %p64, %p65
      %p67 = scmp.ne.s32.totalorder %s55, %s56
      %p68 = scmp.eq.s32.totalorder %s25, 1
      %p69 = por %p67, %p68
      %p71 = scmp.ne.s32.totalorder %s56, %s70
      %p72 = scmp.eq.s32.totalorder %s25, 0
      %p73 = por %p71, %p72
      %s75 = sadd.s32 %s74, 1
      %p78 = scmp.eq.s32.totalorder %s19, 1
      %p79 = scmp.ne.s32.totalorder %s74, %s76
      %p80 = scmp.eq.s32.totalorder %s19, 0
      %p81 = por %p79, %p80
      %p82 = scmp.ne.s32.totalorder %s74, %s76
      %p83 = scmp.eq.s32.totalorder %s24, 1
      %p84 = por %p82, %p83
      %p85 = scmp.ne.s32.totalorder %s76, %s77
      %p86 = scmp.eq.s32.totalorder %s24, 0
      %p87 = por %p85, %p86
      %p88 = scmp.ne.s32.totalorder %s76, %s77
      %p89 = scmp.eq.s32.totalorder %s25, 1
      %p90 = por %p88, %p89
      %p92 = scmp.ne.s32.totalorder %s77, %s91
      %p93 = scmp.eq.s32.totalorder %s25, 0
      %p94 = por %p92, %p93
      %s96 = sadd.s32 %s95, 1
      %p99 = scmp.eq.s32.totalorder %s19, 1
      %p100 = scmp.ne.s32.totalorder %s95, %s97
      %p101 = scmp.eq.s32.totalorder %s19, 0
      %p102 = por %p100, %p101
      %p103 = scmp.ne.s32.totalorder %s95, %s97
      %p104 = scmp.eq.s32.totalorder %s24, 1
      %p105 = por %p103, %p104
      %p106 = scmp.ne.s32.totalorder %s97, %s98
      %p107 = scmp.eq.s32.totalorder %s24, 0
      %p108 = por %p106, %p107
      %p109 = scmp.ne.s32.totalorder %s97, %s98
      %p110 = scmp.eq.s32.totalorder %s25, 1
      %p111 = por %p109, %p110
      %p113 = scmp.ne.s32.totalorder %s98, %s112
      %p114 = scmp.eq.s32.totalorder %s25, 0
      %p115 = por %p113, %p114
      %s117 = sadd.s32 %s116, 1
      %p120 = scmp.eq.s32.totalorder %s19, 1
      %p121 = scmp.ne.s32.totalorder %s116, %s118
      %p122 = scmp.eq.s32.totalorder %s19, 0
      %p123 = por %p121, %p122
      %p124 = scmp.ne.s32.totalorder %s116, %s118
      %p125 = scmp.eq.s32.totalorder %s24, 1
      %p126 = por %p124, %p125
      %p127 = scmp.ne.s32.totalorder %s118, %s119
      %p128 = scmp.eq.s32.totalorder %s24, 0
      %p129 = por %p127, %p128
      %p130 = scmp.ne.s32.totalorder %s118, %s119
      %p131 = scmp.eq.s32.totalorder %s25, 1
      %p132 = por %p130, %p131
      %p134 = scmp.ne.s32.totalorder %s119, %s133
      %p135 = scmp.eq.s32.totalorder %s25, 0
      %p136 = por %p134, %p135
      %s138 = sadd.s32 %s137, 1
      %p141 = scmp.eq.s32.totalorder %s19, 1
      %p142 = scmp.ne.s32.totalorder %s137, %s139
      %p143 = scmp.eq.s32.totalorder %s19, 0
      %p144 = por %p142, %p143
      %p145 = scmp.ne.s32.totalorder %s137, %s139
      %p146 = scmp.eq.s32.totalorder %s24, 1
      %p147 = por %p145, %p146
      %p148 = scmp.ne.s32.totalorder %s139, %s140
      %p149 = scmp.eq.s32.totalorder %s24, 0
      %p150 = por %p148, %p149
      %p151 = scmp.ne.s32.totalorder %s139, %s140
      %p152 = scmp.eq.s32.totalorder %s25, 1
      %p153 = por %p151, %p152
      %p155 = scmp.ne.s32.totalorder %s140, %s154
      %p156 = scmp.eq.s32.totalorder %s25, 0
      %p157 = por %p155, %p156
      %s158 = ssub.s32 %s19, %s26
      %p159 = scmp.eq.s32.totalorder %s158, 0
      %s161 = sadd.s32 %s160, 1
      %s162 = scalar_select %p159, %s160, %s161
      %p165 = pneg %p159
      %p166 = scmp.eq.s32.totalorder %s19, 1
      %p167 = por %p165, %p166
      %p168 = scmp.ne.s32.totalorder %s160, %s163
      %p169 = scmp.eq.s32.totalorder %s19, 0
      %p170 = por %p168, %p169
      %p171 = scmp.ne.s32.totalorder %s160, %s163
      %p172 = scmp.eq.s32.totalorder %s24, 1
      %p173 = por %p171, %p172
      %p174 = scmp.ne.s32.totalorder %s163, %s164
      %p175 = scmp.eq.s32.totalorder %s24, 0
      %p176 = por %p174, %p175
      %p177 = scmp.ne.s32.totalorder %s163, %s164
      %p178 = scmp.eq.s32.totalorder %s25, 1
      %p179 = por %p177, %p178
      %p181 = scmp.ne.s32.totalorder %s164, %s180
      %p182 = scmp.eq.s32.totalorder %s25, 0
      %p183 = por %p181, %p182
      %p184 = scmp.le.s32.totalorder 1, %s19
      %p185 = scmp.lt.s32.totalorder %s19, 3
      %p186 = pnand %p184, %p185
      %p187 = pneg %p186
      // Predicated region
      $region9: #{tpu_custom_call.1} parent=5 // pred_check
        _
      $region10: #{tpu_custom_call.1} parent=5 // pred_check_branch
        %189 = sbr.rel (%p186) target = $region12
      $region11: #{tpu_custom_call.1} parent=5 // pred_region
        %s190 = ssub.s32 %s19, 1
        // Predicated region
        $region13: #{tpu_custom_call.1} parent=11 // pred_check
          %p191 = pneg %p66
        $region14: #{tpu_custom_call.1} parent=11 // pred_check_branch
          %193 = sbr.rel (%p191) target = $region16
        $region15: #{tpu_custom_call.1} parent=11 // pred_region
          %s195 = ssub.s32 1152, 1152
          %196 = vsyncadd [#allocation7], %s195
          %s197 = sshll.u32 [#allocation6], 4
          %s198 = int_to_ptr.vmem [resolvable:$true] %s197
          %203 = dma.hbm_to_vmem [thread:$0]  %s1, 1152, %s198, [#allocation7], 64, 64, 4
        $region16: #{tpu_custom_call.1} parent=11 // pred_fallthru
          _
        // Predicated region
        $region17: #{tpu_custom_call.1} parent=11 // pred_check
          %p204 = pneg %p87
        $region18: #{tpu_custom_call.1} parent=11 // pred_check_branch
          %206 = sbr.rel (%p204) target = $region20
        $region19: #{tpu_custom_call.1} parent=11 // pred_region
          _
        $region20: #{tpu_custom_call.1} parent=11 // pred_fallthru
          _
        // Predicated region
        $region21: #{tpu_custom_call.1} parent=11 // pred_check
          %p207 = pneg %p108
        $region22: #{tpu_custom_call.1} parent=11 // pred_check_branch
          %209 = sbr.rel (%p207) target = $region24
        $region23: #{tpu_custom_call.1} parent=11 // pred_region
          %s211 = ssub.s32 1152, 1152
          %212 = vsyncadd [#allocation7], %s211
          %s213 = sshll.u32 [#allocation8], 4
          %s214 = int_to_ptr.vmem [resolvable:$true] %s213
          %219 = dma.hbm_to_vmem [thread:$0]  %s3, 1152, %s214, [#allocation7], 64, 64, 4
        $region24: #{tpu_custom_call.1} parent=11 // pred_fallthru
          _
        // Predicated region
        $region25: #{tpu_custom_call.1} parent=11 // pred_check
          %p220 = pneg %p129
        $region26: #{tpu_custom_call.1} parent=11 // pred_check_branch
          %222 = sbr.rel (%p220) target = $region28
        $region27: #{tpu_custom_call.1} parent=11 // pred_region
          _
        $region28: #{tpu_custom_call.1} parent=11 // pred_fallthru
          _
        // Predicated region
        $region29: #{tpu_custom_call.1} parent=11 // pred_check
          %p223 = pneg %p150
        $region30: #{tpu_custom_call.1} parent=11 // pred_check_branch
          %225 = sbr.rel (%p223) target = $region32
        $region31: #{tpu_custom_call.1} parent=11 // pred_region
          _
        $region32: #{tpu_custom_call.1} parent=11 // pred_fallthru
          _
      $region12: #{tpu_custom_call.1} parent=5 // pred_fallthru
        _
      %p226 = scmp.lt.s32.totalorder %s19, 2
      // Predicated region
      $region33: #{tpu_custom_call.1} parent=5 // pred_check
        %p227 = pneg %p226
      $region34: #{tpu_custom_call.1} parent=5 // pred_check_branch
        %229 = sbr.rel (%p227) target = $region36
      $region35: #{tpu_custom_call.1} parent=5 // pred_region
        // Predicated region
        $region37: #{tpu_custom_call.1} parent=35 // pred_check
          %p230 = pneg %p39
        $region38: #{tpu_custom_call.1} parent=35 // pred_check_branch
          %232 = sbr.rel (%p230) target = $region40
        $region39: #{tpu_custom_call.1} parent=35 // pred_region
          %s233 = sand.u32 %s29, 1
          %s234 = scalar_lea.sflag [#allocation4], %s233
          %s235 = sand.u32 %s29, 1
          %s236 = smul.addr %s235, 32
          %s237 = scalar_lea.vmem [#allocation3], %s236
          %s239 = ssub.s32 512, 512
          %240 = vsyncadd %s234, %s239
          %s241 = smul.addr %s19, 8
          %s242 = smul.addr %s241, 64
          %s243 = scalar_lea.hbm %s0, %s242
          %s244 = sshll.u32 %s237, 4
          %s245 = int_to_ptr.vmem [resolvable:$true] %s244
          %250 = dma.hbm_to_vmem [thread:$0]  %s243, 512, %s245, %s234, 256, 256, 16
        $region40: #{tpu_custom_call.1} parent=35 // pred_fallthru
          _
      $region36: #{tpu_custom_call.1} parent=5 // pred_fallthru
        _
      %p251 = scmp.le.s32.totalorder 1, %s19
      %p252 = scmp.lt.s32.totalorder %s19, 3
      %p253 = pnand %p251, %p252
      %p254 = pneg %p253
      // Predicated region
      $region41: #{tpu_custom_call.1} parent=5 // pred_check
        _
      $region42: #{tpu_custom_call.1} parent=5 // pred_check_branch
        %256 = sbr.rel (%p253) target = $region44
      $region43: #{tpu_custom_call.1} parent=5 // pred_region
        %s257 = ssub.s32 %s19, 1
        %s258 = sand.u32 %s32, 1
        %s259 = scalar_lea.sflag [#allocation4], %s258
        %s260 = sand.u32 %s32, 1
        %s261 = smul.addr %s260, 32
        %s262 = scalar_lea.vmem [#allocation3], %s261
        // Predicated region
        $region45: #{tpu_custom_call.1} parent=43 // pred_check
          %p263 = pneg %p45
        $region46: #{tpu_custom_call.1} parent=43 // pred_check_branch
          %265 = sbr.rel (%p263) target = $region48
        $region47: #{tpu_custom_call.1} parent=43 // pred_region
          %266 = dma.done %s259, 512
        $region48: #{tpu_custom_call.1} parent=43 // pred_fallthru
          _
        // Predicated region
        $region49: #{tpu_custom_call.1} parent=43 // pred_check
          %p267 = pneg %p66
        $region50: #{tpu_custom_call.1} parent=43 // pred_check_branch
          %269 = sbr.rel (%p267) target = $region52
        $region51: #{tpu_custom_call.1} parent=43 // pred_region
          %270 = dma.done [#allocation7], 1152
        $region52: #{tpu_custom_call.1} parent=43 // pred_fallthru
          _
        // Predicated region
        $region53: #{tpu_custom_call.1} parent=43 // pred_check
          %p271 = pneg %p108
        $region54: #{tpu_custom_call.1} parent=43 // pred_check_branch
          %273 = sbr.rel (%p271) target = $region56
        $region55: #{tpu_custom_call.1} parent=43 // pred_region
          %274 = dma.done [#allocation7], 1152
        $region56: #{tpu_custom_call.1} parent=43 // pred_fallthru
          _
        %s275 = sand.u32 %s32, 1
        %s276 = scalar_lea.sflag [#allocation4], %s275
        %s277 = sand.u32 %s32, 1
        %s278 = smul.addr %s277, 32
        %s279 = scalar_lea.vmem [#allocation3], %s278
        %p280 = pneg %p45
        %p281 = pneg %p42
        %p282 = pneg %p66
        %p283 = pneg %p63
        %p284 = pneg %p87
        %p285 = pneg %p84
        %p286 = pneg %p108
        %p287 = pneg %p105
        %p288 = pneg %p129
        %p289 = pneg %p126
        %p290 = pneg %p150
        %p291 = pneg %p147
        %p292 = pneg %p176
        %p293 = pneg %p173
        %s294 = sand.u32 %s163, 1
        %s295 = scalar_lea.sflag [#allocation5], %s294
        %s296 = sand.u32 %s163, 1
        %s297 = smul.addr %s296, 48
        %s298 = scalar_lea.vmem [#allocation9], %s297
        %p300 = scmp.eq.s32.totalorder %s24, 0
        // Predicated region
        $region57: #{tpu_custom_call.1} parent=43 // pred_check
          %p301 = pneg %p300
        $region58: #{tpu_custom_call.1} parent=43 // pred_check_branch
          %303 = sbr.rel (%p301) target = $region60
        $region59: #{tpu_custom_call.1} parent=43 // pred_region
          %304 = vst [vmem:[#allocation2] sm:$0xf] 0
          %305 = vst [vmem:[#allocation2 + $0x10] sm:$0xf] 0
          %vm306 = vcmask 708128
          %307 = vst.msk [vmem:[#allocation2 + $0xc] sm:$0xf] %vm306, 0
          %308 = vst.msk [vmem:[#allocation2 + $0x1c] sm:$0xf] %vm306, 0
        $region60: #{tpu_custom_call.1} parent=43 // pred_fallthru
          _
        %v309 = vld [vmem:[%s5] sm:$0x7]
        %v310 = vld [vmem:[%s2] sm:$0xff]
        %v311 = vld [vmem:[%s2 + $0x8] sm:$0xff]
        %313 = vset.pattern.permute.xlu0 0
        %314 = vperm.xlu0 %313, %v310
        %v315 = vpop.permute.xlu0 %314
        %318 = vset.pattern.permute.xlu0 0
        %319 = vperm.xlu0 %318, %v311
        %v320 = vpop.permute.xlu0 %319
        %v322 = vld [vmem:[#allocation6] sm:$0xf]
        %v323 = vld [vmem:[#allocation6 + $0x4] sm:$0xf]
        %v324 = vld [vmem:[%s262] sm:$0xff]
        %v325 = vld [vmem:[%s262 + $0x8] sm:$0xf]
        %v326 = vld [vmem:[%s262 + $0x10] sm:$0xff]
        %v327 = vld [vmem:[%s262 + $0x18] sm:$0xf]
        %v330 = vunpack.c.l.b16 %v322
        %v331 = vunpack.c.l.b16 %v323
        %v332 = vpack.c.b16 %v331, %v330
        %v337 = vunpack.c.l.b16 %v324
        %v338 = vunpack.c.h.b16 %v324
        %v339 = vunpack.c.l.b16 %v325
        %v340 = vunpack.c.l.b16 %v326
        %v341 = vunpack.c.h.b16 %v326
        %v342 = vunpack.c.l.b16 %v327
        %v343 = vpack.c.b16 %v340, %v337
        %v344 = vpack.c.b16 %v341, %v338
        %v345 = vpack.c.b16 %v342, %v339
        %346 = vrot.lane.b32.xlu0 %v343, 111
        %v347 = vpop.permute.xlu0 %346
        %348 = vrot.lane.b32.xlu0 %v344, 111
        %v349 = vpop.permute.xlu0 %348
        %350 = vrot.lane.b32.xlu0 %v345, 111
        %v351 = vpop.permute.xlu0 %350
        %vm352 = vcmask 908288
        %v353 = vsel %vm352, %v347, %v349
        %v354 = vsel %vm352, %v349, %v351
        %vm358 = vcmask 130048
        %v360 = vsel %vm358, %v332, 0
        %362 = vmatprep.subr.bf16.mxu0 0
        %363 = vmatpush1.bf16.msra.mxu0 0
        %364 = vmatprep.subr.bf16.mxu0 0
        %365 = vmatpush1.bf16.msra.mxu0 0
        %366 = vmatprep.subr.bf16.mxu0 0
        %367 = vmatpush1.bf16.msra.mxu0 0
        %368 = vmatprep.subr.bf16.mxu0 0
        %369 = vmatpush1.bf16.msra.mxu0 0
        %370 = vmatprep.subr.bf16.mxu0 0
        %371 = vmatpush1.bf16.msra.mxu0 0
        %372 = vmatprep.subr.bf16.mxu0 0
        %373 = vmatpush1.bf16.msra.mxu0 0
        %374 = vmatprep.subr.bf16.mxu0 0
        %375 = vmatpush1.bf16.msra.mxu0 0
        %376 = vmatprep.subr.bf16.mxu0 %v354
        %377 = vmatpush1.bf16.msra.mxu0 %v353
        %378 = vmatprep.subr.bf16.mxu0 0
        %379 = vmatpush2.bf16.msra.mxu0 0
        %380 = vmatprep.subr.bf16.mxu0 0
        %381 = vmatpush2.bf16.msra.mxu0 0
        %382 = vmatprep.subr.bf16.mxu0 0
        %383 = vmatpush2.bf16.msra.mxu0 0
        %384 = vmatprep.subr.bf16.mxu0 0
        %385 = vmatpush2.bf16.msra.mxu0 0
        %386 = vmatprep.subr.bf16.mxu0 0
        %387 = vmatpush2.bf16.msra.mxu0 0
        %388 = vmatprep.subr.bf16.mxu0 0
        %389 = vmatpush2.bf16.msra.mxu0 0
        %390 = vmatprep.subr.bf16.mxu0 0
        %391 = vmatpush2.bf16.msra.mxu0 0
        %392 = vmatprep.subr.bf16.mxu0 0
        %393 = vmatpush2.bf16.msra.mxu0 0
        %394 = vmatprep.mubr.bf16.mxu0 0
        %395 = vmatmul.mubr.bf16.gmra.mxu0 %v360
        %v396 = vpop.f32.mrf.mxu0
        %v397 = vadd.f32 0.0, %v396
        %v398 = vpop.f32.mrf.mxu0
        %v399 = vadd.f32 0.0, %v398
        %v400 = vpop.f32.mrf.mxu0
        %v401 = vadd.f32 0.0, %v400
        %v402 = vpop.f32.mrf.mxu0
        %v403 = vadd.f32 0.0, %v402
        %404 = vdwg.mxu0
        %405 = vmatprep.subr.bf16.mxu0 0
        %406 = vmatpush1.bf16.msra.mxu0 0
        %407 = vmatprep.subr.bf16.mxu0 0
        %408 = vmatpush1.bf16.msra.mxu0 0
        %409 = vmatprep.subr.bf16.mxu0 0
        %410 = vmatpush1.bf16.msra.mxu0 0
        %411 = vmatprep.subr.bf16.mxu0 0
        %412 = vmatpush1.bf16.msra.mxu0 0
        %413 = vmatprep.subr.bf16.mxu0 0
        %414 = vmatpush1.bf16.msra.mxu0 0
        %415 = vmatprep.subr.bf16.mxu0 0
        %416 = vmatpush1.bf16.msra.mxu0 0
        %417 = vmatprep.subr.bf16.mxu0 0
        %418 = vmatpush1.bf16.msra.mxu0 0
        %419 = vmatprep.subr.bf16.mxu0 0
        %420 = vmatpush1.bf16.msra.mxu0 %v351
        %421 = vmatprep.subr.bf16.mxu0 0
        %422 = vmatpush2.bf16.msra.mxu0 0
        %423 = vmatprep.subr.bf16.mxu0 0
        %424 = vmatpush2.bf16.msra.mxu0 0
        %425 = vmatprep.subr.bf16.mxu0 0
        %426 = vmatpush2.bf16.msra.mxu0 0
        %427 = vmatprep.subr.bf16.mxu0 0
        %428 = vmatpush2.bf16.msra.mxu0 0
        %429 = vmatprep.subr.bf16.mxu0 0
        %430 = vmatpush2.bf16.msra.mxu0 0
        %431 = vmatprep.subr.bf16.mxu0 0
        %432 = vmatpush2.bf16.msra.mxu0 0
        %433 = vmatprep.subr.bf16.mxu0 0
        %434 = vmatpush2.bf16.msra.mxu0 0
        %435 = vmatprep.subr.bf16.mxu0 0
        %436 = vmatpush2.bf16.msra.mxu0 0
        %437 = vmatprep.mubr.bf16.mxu0 0
        %438 = vmatmul.mubr.bf16.gmra.mxu0 %v360
        %v439 = vpop.f32.mrf.mxu0
        %v440 = vadd.f32 0.0, %v439
        %v441 = vpop.f32.mrf.mxu0
        %v442 = vpop.f32.mrf.mxu0
        %v443 = vadd.f32 0.0, %v442
        %v444 = vpop.f32.mrf.mxu0
        %445 = vdwg.mxu0
        %v446 = vadd.f32 %v315, %v397
        %v447 = vadd.f32 %v315, %v399
        %v448 = vadd.f32 %v315, %v440
        %v449 = vadd.f32 %v320, %v401
        %v450 = vadd.f32 %v320, %v403
        %v451 = vadd.f32 %v320, %v443
        %s452 = scalar_lea.vmem [#allocation6], 8
        %v453 = vld [vmem:[%s452] sm:$0xf]
        %v454 = vld [vmem:[%s452 + $0x4] sm:$0xf]
        %v457 = vunpack.c.l.b16 %v453
        %v458 = vunpack.c.l.b16 %v454
        %v459 = vpack.c.b16 %v458, %v457
        %460 = vrot.lane.b32.xlu0 %v343, 110
        %v461 = vpop.permute.xlu0 %460
        %462 = vrot.lane.b32.xlu0 %v344, 110
        %v463 = vpop.permute.xlu0 %462
        %464 = vrot.lane.b32.xlu0 %v345, 110
        %v465 = vpop.permute.xlu0 %464
        %vm466 = vcmask 900096
        %v467 = vsel %vm466, %v461, %v463
        %v468 = vsel %vm466, %v463, %v465
        %v473 = vsel %vm358, %v459, 0
        %475 = vmatprep.subr.bf16.mxu0 0
        %476 = vmatpush1.bf16.msra.mxu0 0
        %477 = vmatprep.subr.bf16.mxu0 0
        %478 = vmatpush1.bf16.msra.mxu0 0
        %479 = vmatprep.subr.bf16.mxu0 0
        %480 = vmatpush1.bf16.msra.mxu0 0
        %481 = vmatprep.subr.bf16.mxu0 0
        %482 = vmatpush1.bf16.msra.mxu0 0
        %483 = vmatprep.subr.bf16.mxu0 0
        %484 = vmatpush1.bf16.msra.mxu0 0
        %485 = vmatprep.subr.bf16.mxu0 0
        %486 = vmatpush1.bf16.msra.mxu0 0
        %487 = vmatprep.subr.bf16.mxu0 0
        %488 = vmatpush1.bf16.msra.mxu0 0
        %489 = vmatprep.subr.bf16.mxu0 %v468
        %490 = vmatpush1.bf16.msra.mxu0 %v467
        %491 = vmatprep.subr.bf16.mxu0 0
        %492 = vmatpush2.bf16.msra.mxu0 0
        %493 = vmatprep.subr.bf16.mxu0 0
        %494 = vmatpush2.bf16.msra.mxu0 0
        %495 = vmatprep.subr.bf16.mxu0 0
        %496 = vmatpush2.bf16.msra.mxu0 0
        %497 = vmatprep.subr.bf16.mxu0 0
        %498 = vmatpush2.bf16.msra.mxu0 0
        %499 = vmatprep.subr.bf16.mxu0 0
        %500 = vmatpush2.bf16.msra.mxu0 0
        %501 = vmatprep.subr.bf16.mxu0 0
        %502 = vmatpush2.bf16.msra.mxu0 0
        %503 = vmatprep.subr.bf16.mxu0 0
        %504 = vmatpush2.bf16.msra.mxu0 0
        %505 = vmatprep.subr.bf16.mxu0 0
        %506 = vmatpush2.bf16.msra.mxu0 0
        %507 = vmatprep.mubr.bf16.mxu0 0
        %508 = vmatmul.mubr.bf16.gmra.mxu0 %v473
        %v509 = vpop.f32.mrf.mxu0
        %v510 = vadd.f32 0.0, %v509
        %v511 = vpop.f32.mrf.mxu0
        %v512 = vadd.f32 0.0, %v511
        %v513 = vpop.f32.mrf.mxu0
        %v514 = vadd.f32 0.0, %v513
        %v515 = vpop.f32.mrf.mxu0
        %v516 = vadd.f32 0.0, %v515
        %517 = vdwg.mxu0
        %518 = vmatprep.subr.bf16.mxu0 0
        %519 = vmatpush1.bf16.msra.mxu0 0
        %520 = vmatprep.subr.bf16.mxu0 0
        %521 = vmatpush1.bf16.msra.mxu0 0
        %522 = vmatprep.subr.bf16.mxu0 0
        %523 = vmatpush1.bf16.msra.mxu0 0
        %524 = vmatprep.subr.bf16.mxu0 0
        %525 = vmatpush1.bf16.msra.mxu0 0
        %526 = vmatprep.subr.bf16.mxu0 0
        %527 = vmatpush1.bf16.msra.mxu0 0
        %528 = vmatprep.subr.bf16.mxu0 0
        %529 = vmatpush1.bf16.msra.mxu0 0
        %530 = vmatprep.subr.bf16.mxu0 0
        %531 = vmatpush1.bf16.msra.mxu0 0
        %532 = vmatprep.subr.bf16.mxu0 0
        %533 = vmatpush1.bf16.msra.mxu0 %v465
        %534 = vmatprep.subr.bf16.mxu0 0
        %535 = vmatpush2.bf16.msra.mxu0 0
        %536 = vmatprep.subr.bf16.mxu0 0
        %537 = vmatpush2.bf16.msra.mxu0 0
        %538 = vmatprep.subr.bf16.mxu0 0
        %539 = vmatpush2.bf16.msra.mxu0 0
        %540 = vmatprep.subr.bf16.mxu0 0
        %541 = vmatpush2.bf16.msra.mxu0 0
        %542 = vmatprep.subr.bf16.mxu0 0
        %543 = vmatpush2.bf16.msra.mxu0 0
        %544 = vmatprep.subr.bf16.mxu0 0
        %545 = vmatpush2.bf16.msra.mxu0 0
        %546 = vmatprep.subr.bf16.mxu0 0
        %547 = vmatpush2.bf16.msra.mxu0 0
        %548 = vmatprep.subr.bf16.mxu0 0
        %549 = vmatpush2.bf16.msra.mxu0 0
        %550 = vmatprep.mubr.bf16.mxu0 0
        %551 = vmatmul.mubr.bf16.gmra.mxu0 %v473
        %v552 = vpop.f32.mrf.mxu0
        %v553 = vadd.f32 0.0, %v552
        %v554 = vpop.f32.mrf.mxu0
        %v555 = vpop.f32.mrf.mxu0
        %v556 = vadd.f32 0.0, %v555
        %v557 = vpop.f32.mrf.mxu0
        %558 = vdwg.mxu0
        %v559 = vadd.f32 %v446, %v510
        %v560 = vadd.f32 %v447, %v512
        %v561 = vadd.f32 %v448, %v553
        %v562 = vadd.f32 %v449, %v514
        %v563 = vadd.f32 %v450, %v516
        %v564 = vadd.f32 %v451, %v556
        %s565 = scalar_lea.vmem [#allocation6], 16
        %v566 = vld [vmem:[%s565] sm:$0xf]
        %v567 = vld [vmem:[%s565 + $0x4] sm:$0xf]
        %v570 = vunpack.c.l.b16 %v566
        %v571 = vunpack.c.l.b16 %v567
        %v572 = vpack.c.b16 %v571, %v570
        %573 = vrot.lane.b32.xlu0 %v343, 109
        %v574 = vpop.permute.xlu0 %573
        %575 = vrot.lane.b32.xlu0 %v344, 109
        %v576 = vpop.permute.xlu0 %575
        %577 = vrot.lane.b32.xlu0 %v345, 109
        %v578 = vpop.permute.xlu0 %577
        %vm579 = vcmask 891904
        %v580 = vsel %vm579, %v574, %v576
        %v581 = vsel %vm579, %v576, %v578
        %v586 = vsel %vm358, %v572, 0
        %588 = vmatprep.subr.bf16.mxu0 0
        %589 = vmatpush1.bf16.msra.mxu0 0
        %590 = vmatprep.subr.bf16.mxu0 0
        %591 = vmatpush1.bf16.msra.mxu0 0
        %592 = vmatprep.subr.bf16.mxu0 0
        %593 = vmatpush1.bf16.msra.mxu0 0
        %594 = vmatprep.subr.bf16.mxu0 0
        %595 = vmatpush1.bf16.msra.mxu0 0
        %596 = vmatprep.subr.bf16.mxu0 0
        %597 = vmatpush1.bf16.msra.mxu0 0
        %598 = vmatprep.subr.bf16.mxu0 0
        %599 = vmatpush1.bf16.msra.mxu0 0
        %600 = vmatprep.subr.bf16.mxu0 0
        %601 = vmatpush1.bf16.msra.mxu0 0
        %602 = vmatprep.subr.bf16.mxu0 %v581
        %603 = vmatpush1.bf16.msra.mxu0 %v580
        %604 = vmatprep.subr.bf16.mxu0 0
        %605 = vmatpush2.bf16.msra.mxu0 0
        %606 = vmatprep.subr.bf16.mxu0 0
        %607 = vmatpush2.bf16.msra.mxu0 0
        %608 = vmatprep.subr.bf16.mxu0 0
        %609 = vmatpush2.bf16.msra.mxu0 0
        %610 = vmatprep.subr.bf16.mxu0 0
        %611 = vmatpush2.bf16.msra.mxu0 0
        %612 = vmatprep.subr.bf16.mxu0 0
        %613 = vmatpush2.bf16.msra.mxu0 0
        %614 = vmatprep.subr.bf16.mxu0 0
        %615 = vmatpush2.bf16.msra.mxu0 0
        %616 = vmatprep.subr.bf16.mxu0 0
        %617 = vmatpush2.bf16.msra.mxu0 0
        %618 = vmatprep.subr.bf16.mxu0 0
        %619 = vmatpush2.bf16.msra.mxu0 0
        %620 = vmatprep.mubr.bf16.mxu0 0
        %621 = vmatmul.mubr.bf16.gmra.mxu0 %v586
        %v622 = vpop.f32.mrf.mxu0
        %v623 = vadd.f32 0.0, %v622
        %v624 = vpop.f32.mrf.mxu0
        %v625 = vadd.f32 0.0, %v624
        %v626 = vpop.f32.mrf.mxu0
        %v627 = vadd.f32 0.0, %v626
        %v628 = vpop.f32.mrf.mxu0
        %v629 = vadd.f32 0.0, %v628
        %630 = vdwg.mxu0
        %631 = vmatprep.subr.bf16.mxu0 0
        %632 = vmatpush1.bf16.msra.mxu0 0
        %633 = vmatprep.subr.bf16.mxu0 0
        %634 = vmatpush1.bf16.msra.mxu0 0
        %635 = vmatprep.subr.bf16.mxu0 0
        %636 = vmatpush1.bf16.msra.mxu0 0
        %637 = vmatprep.subr.bf16.mxu0 0
        %638 = vmatpush1.bf16.msra.mxu0 0
        %639 = vmatprep.subr.bf16.mxu0 0
        %640 = vmatpush1.bf16.msra.mxu0 0
        %641 = vmatprep.subr.bf16.mxu0 0
        %642 = vmatpush1.bf16.msra.mxu0 0
        %643 = vmatprep.subr.bf16.mxu0 0
        %644 = vmatpush1.bf16.msra.mxu0 0
        %645 = vmatprep.subr.bf16.mxu0 0
        %646 = vmatpush1.bf16.msra.mxu0 %v578
        %647 = vmatprep.subr.bf16.mxu0 0
        %648 = vmatpush2.bf16.msra.mxu0 0
        %649 = vmatprep.subr.bf16.mxu0 0
        %650 = vmatpush2.bf16.msra.mxu0 0
        %651 = vmatprep.subr.bf16.mxu0 0
        %652 = vmatpush2.bf16.msra.mxu0 0
        %653 = vmatprep.subr.bf16.mxu0 0
        %654 = vmatpush2.bf16.msra.mxu0 0
        %655 = vmatprep.subr.bf16.mxu0 0
        %656 = vmatpush2.bf16.msra.mxu0 0
        %657 = vmatprep.subr.bf16.mxu0 0
        %658 = vmatpush2.bf16.msra.mxu0 0
        %659 = vmatprep.subr.bf16.mxu0 0
        %660 = vmatpush2.bf16.msra.mxu0 0
        %661 = vmatprep.subr.bf16.mxu0 0
        %662 = vmatpush2.bf16.msra.mxu0 0
        %663 = vmatprep.mubr.bf16.mxu0 0
        %664 = vmatmul.mubr.bf16.gmra.mxu0 %v586
        %v665 = vpop.f32.mrf.mxu0
        %v666 = vadd.f32 0.0, %v665
        %v667 = vpop.f32.mrf.mxu0
        %v668 = vpop.f32.mrf.mxu0
        %v669 = vadd.f32 0.0, %v668
        %v670 = vpop.f32.mrf.mxu0
        %671 = vdwg.mxu0
        %v672 = vadd.f32 %v559, %v623
        %v673 = vadd.f32 %v560, %v625
        %v674 = vadd.f32 %v561, %v666
        %v675 = vadd.f32 %v562, %v627
        %v676 = vadd.f32 %v563, %v629
        %v677 = vadd.f32 %v564, %v669
        %s678 = scalar_lea.vmem [#allocation6], 24
        %v679 = vld [vmem:[%s678] sm:$0xf]
        %v680 = vld [vmem:[%s678 + $0x4] sm:$0xf]
        %v683 = vunpack.c.l.b16 %v679
        %v684 = vunpack.c.l.b16 %v680
        %v685 = vpack.c.b16 %v684, %v683
        %686 = vrot.lane.b32.xlu0 %v343, 93
        %v687 = vpop.permute.xlu0 %686
        %688 = vrot.lane.b32.xlu0 %v344, 93
        %v689 = vpop.permute.xlu0 %688
        %690 = vrot.lane.b32.xlu0 %v345, 93
        %v691 = vpop.permute.xlu0 %690
        %vm692 = vcmask 760832
        %v693 = vsel %vm692, %v687, %v689
        %v694 = vsel %vm692, %v689, %v691
        %v699 = vsel %vm358, %v685, 0
        %701 = vmatprep.subr.bf16.mxu0 0
        %702 = vmatpush1.bf16.msra.mxu0 0
        %703 = vmatprep.subr.bf16.mxu0 0
        %704 = vmatpush1.bf16.msra.mxu0 0
        %705 = vmatprep.subr.bf16.mxu0 0
        %706 = vmatpush1.bf16.msra.mxu0 0
        %707 = vmatprep.subr.bf16.mxu0 0
        %708 = vmatpush1.bf16.msra.mxu0 0
        %709 = vmatprep.subr.bf16.mxu0 0
        %710 = vmatpush1.bf16.msra.mxu0 0
        %711 = vmatprep.subr.bf16.mxu0 0
        %712 = vmatpush1.bf16.msra.mxu0 0
        %713 = vmatprep.subr.bf16.mxu0 0
        %714 = vmatpush1.bf16.msra.mxu0 0
        %715 = vmatprep.subr.bf16.mxu0 %v694
        %716 = vmatpush1.bf16.msra.mxu0 %v693
        %717 = vmatprep.subr.bf16.mxu0 0
        %718 = vmatpush2.bf16.msra.mxu0 0
        %719 = vmatprep.subr.bf16.mxu0 0
        %720 = vmatpush2.bf16.msra.mxu0 0
        %721 = vmatprep.subr.bf16.mxu0 0
        %722 = vmatpush2.bf16.msra.mxu0 0
        %723 = vmatprep.subr.bf16.mxu0 0
        %724 = vmatpush2.bf16.msra.mxu0 0
        %725 = vmatprep.subr.bf16.mxu0 0
        %726 = vmatpush2.bf16.msra.mxu0 0
        %727 = vmatprep.subr.bf16.mxu0 0
        %728 = vmatpush2.bf16.msra.mxu0 0
        %729 = vmatprep.subr.bf16.mxu0 0
        %730 = vmatpush2.bf16.msra.mxu0 0
        %731 = vmatprep.subr.bf16.mxu0 0
        %732 = vmatpush2.bf16.msra.mxu0 0
        %733 = vmatprep.mubr.bf16.mxu0 0
        %734 = vmatmul.mubr.bf16.gmra.mxu0 %v699
        %v735 = vpop.f32.mrf.mxu0
        %v736 = vadd.f32 0.0, %v735
        %v737 = vpop.f32.mrf.mxu0
        %v738 = vadd.f32 0.0, %v737
        %v739 = vpop.f32.mrf.mxu0
        %v740 = vadd.f32 0.0, %v739
        %v741 = vpop.f32.mrf.mxu0
        %v742 = vadd.f32 0.0, %v741
        %743 = vdwg.mxu0
        %744 = vmatprep.subr.bf16.mxu0 0
        %745 = vmatpush1.bf16.msra.mxu0 0
        %746 = vmatprep.subr.bf16.mxu0 0
        %747 = vmatpush1.bf16.msra.mxu0 0
        %748 = vmatprep.subr.bf16.mxu0 0
        %749 = vmatpush1.bf16.msra.mxu0 0
        %750 = vmatprep.subr.bf16.mxu0 0
        %751 = vmatpush1.bf16.msra.mxu0 0
        %752 = vmatprep.subr.bf16.mxu0 0
        %753 = vmatpush1.bf16.msra.mxu0 0
        %754 = vmatprep.subr.bf16.mxu0 0
        %755 = vmatpush1.bf16.msra.mxu0 0
        %756 = vmatprep.subr.bf16.mxu0 0
        %757 = vmatpush1.bf16.msra.mxu0 0
        %758 = vmatprep.subr.bf16.mxu0 0
        %759 = vmatpush1.bf16.msra.mxu0 %v691
        %760 = vmatprep.subr.bf16.mxu0 0
        %761 = vmatpush2.bf16.msra.mxu0 0
        %762 = vmatprep.subr.bf16.mxu0 0
        %763 = vmatpush2.bf16.msra.mxu0 0
        %764 = vmatprep.subr.bf16.mxu0 0
        %765 = vmatpush2.bf16.msra.mxu0 0
        %766 = vmatprep.subr.bf16.mxu0 0
        %767 = vmatpush2.bf16.msra.mxu0 0
        %768 = vmatprep.subr.bf16.mxu0 0
        %769 = vmatpush2.bf16.msra.mxu0 0
        %770 = vmatprep.subr.bf16.mxu0 0
        %771 = vmatpush2.bf16.msra.mxu0 0
        %772 = vmatprep.subr.bf16.mxu0 0
        %773 = vmatpush2.bf16.msra.mxu0 0
        %774 = vmatprep.subr.bf16.mxu0 0
        %775 = vmatpush2.bf16.msra.mxu0 0
        %776 = vmatprep.mubr.bf16.mxu0 0
        %777 = vmatmul.mubr.bf16.gmra.mxu0 %v699
        %v778 = vpop.f32.mrf.mxu0
        %v779 = vadd.f32 0.0, %v778
        %v780 = vpop.f32.mrf.mxu0
        %v781 = vpop.f32.mrf.mxu0
        %v782 = vadd.f32 0.0, %v781
        %v783 = vpop.f32.mrf.mxu0
        %784 = vdwg.mxu0
        %v785 = vadd.f32 %v672, %v736
        %v786 = vadd.f32 %v673, %v738
        %v787 = vadd.f32 %v674, %v779
        %v788 = vadd.f32 %v675, %v740
        %v789 = vadd.f32 %v676, %v742
        %v790 = vadd.f32 %v677, %v782
        %s791 = scalar_lea.vmem [#allocation6], 32
        %v792 = vld [vmem:[%s791] sm:$0xf]
        %v793 = vld [vmem:[%s791 + $0x4] sm:$0xf]
        %v796 = vunpack.c.l.b16 %v792
        %v797 = vunpack.c.l.b16 %v793
        %v798 = vpack.c.b16 %v797, %v796
        %799 = vrot.lane.b32.xlu0 %v343, 92
        %v800 = vpop.permute.xlu0 %799
        %801 = vrot.lane.b32.xlu0 %v344, 92
        %v802 = vpop.permute.xlu0 %801
        %803 = vrot.lane.b32.xlu0 %v345, 92
        %v804 = vpop.permute.xlu0 %803
        %vm805 = vcmask 752640
        %v806 = vsel %vm805, %v800, %v802
        %v807 = vsel %vm805, %v802, %v804
        %v812 = vsel %vm358, %v798, 0
        %814 = vmatprep.subr.bf16.mxu0 0
        %815 = vmatpush1.bf16.msra.mxu0 0
        %816 = vmatprep.subr.bf16.mxu0 0
        %817 = vmatpush1.bf16.msra.mxu0 0
        %818 = vmatprep.subr.bf16.mxu0 0
        %819 = vmatpush1.bf16.msra.mxu0 0
        %820 = vmatprep.subr.bf16.mxu0 0
        %821 = vmatpush1.bf16.msra.mxu0 0
        %822 = vmatprep.subr.bf16.mxu0 0
        %823 = vmatpush1.bf16.msra.mxu0 0
        %824 = vmatprep.subr.bf16.mxu0 0
        %825 = vmatpush1.bf16.msra.mxu0 0
        %826 = vmatprep.subr.bf16.mxu0 0
        %827 = vmatpush1.bf16.msra.mxu0 0
        %828 = vmatprep.subr.bf16.mxu0 %v807
        %829 = vmatpush1.bf16.msra.mxu0 %v806
        %830 = vmatprep.subr.bf16.mxu0 0
        %831 = vmatpush2.bf16.msra.mxu0 0
        %832 = vmatprep.subr.bf16.mxu0 0
        %833 = vmatpush2.bf16.msra.mxu0 0
        %834 = vmatprep.subr.bf16.mxu0 0
        %835 = vmatpush2.bf16.msra.mxu0 0
        %836 = vmatprep.subr.bf16.mxu0 0
        %837 = vmatpush2.bf16.msra.mxu0 0
        %838 = vmatprep.subr.bf16.mxu0 0
        %839 = vmatpush2.bf16.msra.mxu0 0
        %840 = vmatprep.subr.bf16.mxu0 0
        %841 = vmatpush2.bf16.msra.mxu0 0
        %842 = vmatprep.subr.bf16.mxu0 0
        %843 = vmatpush2.bf16.msra.mxu0 0
        %844 = vmatprep.subr.bf16.mxu0 0
        %845 = vmatpush2.bf16.msra.mxu0 0
        %846 = vmatprep.mubr.bf16.mxu0 0
        %847 = vmatmul.mubr.bf16.gmra.mxu0 %v812
        %v848 = vpop.f32.mrf.mxu0
        %v849 = vadd.f32 0.0, %v848
        %v850 = vpop.f32.mrf.mxu0
        %v851 = vadd.f32 0.0, %v850
        %v852 = vpop.f32.mrf.mxu0
        %v853 = vadd.f32 0.0, %v852
        %v854 = vpop.f32.mrf.mxu0
        %v855 = vadd.f32 0.0, %v854
        %856 = vdwg.mxu0
        %857 = vmatprep.subr.bf16.mxu0 0
        %858 = vmatpush1.bf16.msra.mxu0 0
        %859 = vmatprep.subr.bf16.mxu0 0
        %860 = vmatpush1.bf16.msra.mxu0 0
        %861 = vmatprep.subr.bf16.mxu0 0
        %862 = vmatpush1.bf16.msra.mxu0 0
        %863 = vmatprep.subr.bf16.mxu0 0
        %864 = vmatpush1.bf16.msra.mxu0 0
        %865 = vmatprep.subr.bf16.mxu0 0
        %866 = vmatpush1.bf16.msra.mxu0 0
        %867 = vmatprep.subr.bf16.mxu0 0
        %868 = vmatpush1.bf16.msra.mxu0 0
        %869 = vmatprep.subr.bf16.mxu0 0
        %870 = vmatpush1.bf16.msra.mxu0 0
        %871 = vmatprep.subr.bf16.mxu0 0
        %872 = vmatpush1.bf16.msra.mxu0 %v804
        %873 = vmatprep.subr.bf16.mxu0 0
        %874 = vmatpush2.bf16.msra.mxu0 0
        %875 = vmatprep.subr.bf16.mxu0 0
        %876 = vmatpush2.bf16.msra.mxu0 0
        %877 = vmatprep.subr.bf16.mxu0 0
        %878 = vmatpush2.bf16.msra.mxu0 0
        %879 = vmatprep.subr.bf16.mxu0 0
        %880 = vmatpush2.bf16.msra.mxu0 0
        %881 = vmatprep.subr.bf16.mxu0 0
        %882 = vmatpush2.bf16.msra.mxu0 0
        %883 = vmatprep.subr.bf16.mxu0 0
        %884 = vmatpush2.bf16.msra.mxu0 0
        %885 = vmatprep.subr.bf16.mxu0 0
        %886 = vmatpush2.bf16.msra.mxu0 0
        %887 = vmatprep.subr.bf16.mxu0 0
        %888 = vmatpush2.bf16.msra.mxu0 0
        %889 = vmatprep.mubr.bf16.mxu0 0
        %890 = vmatmul.mubr.bf16.gmra.mxu0 %v812
        %v891 = vpop.f32.mrf.mxu0
        %v892 = vadd.f32 0.0, %v891
        %v893 = vpop.f32.mrf.mxu0
        %v894 = vpop.f32.mrf.mxu0
        %v895 = vadd.f32 0.0, %v894
        %v896 = vpop.f32.mrf.mxu0
        %897 = vdwg.mxu0
        %v898 = vadd.f32 %v785, %v849
        %v899 = vadd.f32 %v786, %v851
        %v900 = vadd.f32 %v787, %v892
        %v901 = vadd.f32 %v788, %v853
        %v902 = vadd.f32 %v789, %v855
        %v903 = vadd.f32 %v790, %v895
        %s904 = scalar_lea.vmem [#allocation6], 40
        %v905 = vld [vmem:[%s904] sm:$0xf]
        %v906 = vld [vmem:[%s904 + $0x4] sm:$0xf]
        %v909 = vunpack.c.l.b16 %v905
        %v910 = vunpack.c.l.b16 %v906
        %v911 = vpack.c.b16 %v910, %v909
        %912 = vrot.lane.b32.xlu0 %v343, 91
        %v913 = vpop.permute.xlu0 %912
        %914 = vrot.lane.b32.xlu0 %v344, 91
        %v915 = vpop.permute.xlu0 %914
        %916 = vrot.lane.b32.xlu0 %v345, 91
        %v917 = vpop.permute.xlu0 %916
        %vm918 = vcmask 744448
        %v919 = vsel %vm918, %v913, %v915
        %v920 = vsel %vm918, %v915, %v917
        %v925 = vsel %vm358, %v911, 0
        %927 = vmatprep.subr.bf16.mxu0 0
        %928 = vmatpush1.bf16.msra.mxu0 0
        %929 = vmatprep.subr.bf16.mxu0 0
        %930 = vmatpush1.bf16.msra.mxu0 0
        %931 = vmatprep.subr.bf16.mxu0 0
        %932 = vmatpush1.bf16.msra.mxu0 0
        %933 = vmatprep.subr.bf16.mxu0 0
        %934 = vmatpush1.bf16.msra.mxu0 0
        %935 = vmatprep.subr.bf16.mxu0 0
        %936 = vmatpush1.bf16.msra.mxu0 0
        %937 = vmatprep.subr.bf16.mxu0 0
        %938 = vmatpush1.bf16.msra.mxu0 0
        %939 = vmatprep.subr.bf16.mxu0 0
        %940 = vmatpush1.bf16.msra.mxu0 0
        %941 = vmatprep.subr.bf16.mxu0 %v920
        %942 = vmatpush1.bf16.msra.mxu0 %v919
        %943 = vmatprep.subr.bf16.mxu0 0
        %944 = vmatpush2.bf16.msra.mxu0 0
        %945 = vmatprep.subr.bf16.mxu0 0
        %946 = vmatpush2.bf16.msra.mxu0 0
        %947 = vmatprep.subr.bf16.mxu0 0
        %948 = vmatpush2.bf16.msra.mxu0 0
        %949 = vmatprep.subr.bf16.mxu0 0
        %950 = vmatpush2.bf16.msra.mxu0 0
        %951 = vmatprep.subr.bf16.mxu0 0
        %952 = vmatpush2.bf16.msra.mxu0 0
        %953 = vmatprep.subr.bf16.mxu0 0
        %954 = vmatpush2.bf16.msra.mxu0 0
        %955 = vmatprep.subr.bf16.mxu0 0
        %956 = vmatpush2.bf16.msra.mxu0 0
        %957 = vmatprep.subr.bf16.mxu0 0
        %958 = vmatpush2.bf16.msra.mxu0 0
        %959 = vmatprep.mubr.bf16.mxu0 0
        %960 = vmatmul.mubr.bf16.gmra.mxu0 %v925
        %v961 = vpop.f32.mrf.mxu0
        %v962 = vadd.f32 0.0, %v961
        %v963 = vpop.f32.mrf.mxu0
        %v964 = vadd.f32 0.0, %v963
        %v965 = vpop.f32.mrf.mxu0
        %v966 = vadd.f32 0.0, %v965
        %v967 = vpop.f32.mrf.mxu0
        %v968 = vadd.f32 0.0, %v967
        %969 = vdwg.mxu0
        %970 = vmatprep.subr.bf16.mxu0 0
        %971 = vmatpush1.bf16.msra.mxu0 0
        %972 = vmatprep.subr.bf16.mxu0 0
        %973 = vmatpush1.bf16.msra.mxu0 0
        %974 = vmatprep.subr.bf16.mxu0 0
        %975 = vmatpush1.bf16.msra.mxu0 0
        %976 = vmatprep.subr.bf16.mxu0 0
        %977 = vmatpush1.bf16.msra.mxu0 0
        %978 = vmatprep.subr.bf16.mxu0 0
        %979 = vmatpush1.bf16.msra.mxu0 0
        %980 = vmatprep.subr.bf16.mxu0 0
        %981 = vmatpush1.bf16.msra.mxu0 0
        %982 = vmatprep.subr.bf16.mxu0 0
        %983 = vmatpush1.bf16.msra.mxu0 0
        %984 = vmatprep.subr.bf16.mxu0 0
        %985 = vmatpush1.bf16.msra.mxu0 %v917
        %986 = vmatprep.subr.bf16.mxu0 0
        %987 = vmatpush2.bf16.msra.mxu0 0
        %988 = vmatprep.subr.bf16.mxu0 0
        %989 = vmatpush2.bf16.msra.mxu0 0
        %990 = vmatprep.subr.bf16.mxu0 0
        %991 = vmatpush2.bf16.msra.mxu0 0
        %992 = vmatprep.subr.bf16.mxu0 0
        %993 = vmatpush2.bf16.msra.mxu0 0
        %994 = vmatprep.subr.bf16.mxu0 0
        %995 = vmatpush2.bf16.msra.mxu0 0
        %996 = vmatprep.subr.bf16.mxu0 0
        %997 = vmatpush2.bf16.msra.mxu0 0
        %998 = vmatprep.subr.bf16.mxu0 0
        %999 = vmatpush2.bf16.msra.mxu0 0
        %1000 = vmatprep.subr.bf16.mxu0 0
        %1001 = vmatpush2.bf16.msra.mxu0 0
        %1002 = vmatprep.mubr.bf16.mxu0 0
        %1003 = vmatmul.mubr.bf16.gmra.mxu0 %v925
        %v1004 = vpop.f32.mrf.mxu0
        %v1005 = vadd.f32 0.0, %v1004
        %v1006 = vpop.f32.mrf.mxu0
        %v1007 = vpop.f32.mrf.mxu0
        %v1008 = vadd.f32 0.0, %v1007
        %v1009 = vpop.f32.mrf.mxu0
        %1010 = vdwg.mxu0
        %v1011 = vadd.f32 %v898, %v962
        %v1012 = vadd.f32 %v899, %v964
        %v1013 = vadd.f32 %v900, %v1005
        %v1014 = vadd.f32 %v901, %v966
        %v1015 = vadd.f32 %v902, %v968
        %v1016 = vadd.f32 %v903, %v1008
        %s1017 = scalar_lea.vmem [#allocation6], 48
        %v1018 = vld [vmem:[%s1017] sm:$0xf]
        %v1019 = vld [vmem:[%s1017 + $0x4] sm:$0xf]
        %v1022 = vunpack.c.l.b16 %v1018
        %v1023 = vunpack.c.l.b16 %v1019
        %v1024 = vpack.c.b16 %v1023, %v1022
        %1025 = vrot.lane.b32.xlu0 %v343, 75
        %v1026 = vpop.permute.xlu0 %1025
        %1027 = vrot.lane.b32.xlu0 %v344, 75
        %v1028 = vpop.permute.xlu0 %1027
        %1029 = vrot.lane.b32.xlu0 %v345, 75
        %v1030 = vpop.permute.xlu0 %1029
        %vm1031 = vcmask 613376
        %v1032 = vsel %vm1031, %v1026, %v1028
        %v1033 = vsel %vm1031, %v1028, %v1030
        %v1038 = vsel %vm358, %v1024, 0
        %1040 = vmatprep.subr.bf16.mxu0 0
        %1041 = vmatpush1.bf16.msra.mxu0 0
        %1042 = vmatprep.subr.bf16.mxu0 0
        %1043 = vmatpush1.bf16.msra.mxu0 0
        %1044 = vmatprep.subr.bf16.mxu0 0
        %1045 = vmatpush1.bf16.msra.mxu0 0
        %1046 = vmatprep.subr.bf16.mxu0 0
        %1047 = vmatpush1.bf16.msra.mxu0 0
        %1048 = vmatprep.subr.bf16.mxu0 0
        %1049 = vmatpush1.bf16.msra.mxu0 0
        %1050 = vmatprep.subr.bf16.mxu0 0
        %1051 = vmatpush1.bf16.msra.mxu0 0
        %1052 = vmatprep.subr.bf16.mxu0 0
        %1053 = vmatpush1.bf16.msra.mxu0 0
        %1054 = vmatprep.subr.bf16.mxu0 %v1033
        %1055 = vmatpush1.bf16.msra.mxu0 %v1032
        %1056 = vmatprep.subr.bf16.mxu0 0
        %1057 = vmatpush2.bf16.msra.mxu0 0
        %1058 = vmatprep.subr.bf16.mxu0 0
        %1059 = vmatpush2.bf16.msra.mxu0 0
        %1060 = vmatprep.subr.bf16.mxu0 0
        %1061 = vmatpush2.bf16.msra.mxu0 0
        %1062 = vmatprep.subr.bf16.mxu0 0
        %1063 = vmatpush2.bf16.msra.mxu0 0
        %1064 = vmatprep.subr.bf16.mxu0 0
        %1065 = vmatpush2.bf16.msra.mxu0 0
        %1066 = vmatprep.subr.bf16.mxu0 0
        %1067 = vmatpush2.bf16.msra.mxu0 0
        %1068 = vmatprep.subr.bf16.mxu0 0
        %1069 = vmatpush2.bf16.msra.mxu0 0
        %1070 = vmatprep.subr.bf16.mxu0 0
        %1071 = vmatpush2.bf16.msra.mxu0 0
        %1072 = vmatprep.mubr.bf16.mxu0 0
        %1073 = vmatmul.mubr.bf16.gmra.mxu0 %v1038
        %v1074 = vpop.f32.mrf.mxu0
        %v1075 = vadd.f32 0.0, %v1074
        %v1076 = vpop.f32.mrf.mxu0
        %v1077 = vadd.f32 0.0, %v1076
        %v1078 = vpop.f32.mrf.mxu0
        %v1079 = vadd.f32 0.0, %v1078
        %v1080 = vpop.f32.mrf.mxu0
        %v1081 = vadd.f32 0.0, %v1080
        %1082 = vdwg.mxu0
        %1083 = vmatprep.subr.bf16.mxu0 0
        %1084 = vmatpush1.bf16.msra.mxu0 0
        %1085 = vmatprep.subr.bf16.mxu0 0
        %1086 = vmatpush1.bf16.msra.mxu0 0
        %1087 = vmatprep.subr.bf16.mxu0 0
        %1088 = vmatpush1.bf16.msra.mxu0 0
        %1089 = vmatprep.subr.bf16.mxu0 0
        %1090 = vmatpush1.bf16.msra.mxu0 0
        %1091 = vmatprep.subr.bf16.mxu0 0
        %1092 = vmatpush1.bf16.msra.mxu0 0
        %1093 = vmatprep.subr.bf16.mxu0 0
        %1094 = vmatpush1.bf16.msra.mxu0 0
        %1095 = vmatprep.subr.bf16.mxu0 0
        %1096 = vmatpush1.bf16.msra.mxu0 0
        %1097 = vmatprep.subr.bf16.mxu0 0
        %1098 = vmatpush1.bf16.msra.mxu0 %v1030
        %1099 = vmatprep.subr.bf16.mxu0 0
        %1100 = vmatpush2.bf16.msra.mxu0 0
        %1101 = vmatprep.subr.bf16.mxu0 0
        %1102 = vmatpush2.bf16.msra.mxu0 0
        %1103 = vmatprep.subr.bf16.mxu0 0
        %1104 = vmatpush2.bf16.msra.mxu0 0
        %1105 = vmatprep.subr.bf16.mxu0 0
        %1106 = vmatpush2.bf16.msra.mxu0 0
        %1107 = vmatprep.subr.bf16.mxu0 0
        %1108 = vmatpush2.bf16.msra.mxu0 0
        %1109 = vmatprep.subr.bf16.mxu0 0
        %1110 = vmatpush2.bf16.msra.mxu0 0
        %1111 = vmatprep.subr.bf16.mxu0 0
        %1112 = vmatpush2.bf16.msra.mxu0 0
        %1113 = vmatprep.subr.bf16.mxu0 0
        %1114 = vmatpush2.bf16.msra.mxu0 0
        %1115 = vmatprep.mubr.bf16.mxu0 0
        %1116 = vmatmul.mubr.bf16.gmra.mxu0 %v1038
        %v1117 = vpop.f32.mrf.mxu0
        %v1118 = vadd.f32 0.0, %v1117
        %v1119 = vpop.f32.mrf.mxu0
        %v1120 = vpop.f32.mrf.mxu0
        %v1121 = vadd.f32 0.0, %v1120
        %v1122 = vpop.f32.mrf.mxu0
        %1123 = vdwg.mxu0
        %v1124 = vadd.f32 %v1011, %v1075
        %v1125 = vadd.f32 %v1012, %v1077
        %v1126 = vadd.f32 %v1013, %v1118
        %v1127 = vadd.f32 %v1014, %v1079
        %v1128 = vadd.f32 %v1015, %v1081
        %v1129 = vadd.f32 %v1016, %v1121
        %s1130 = scalar_lea.vmem [#allocation6], 56
        %v1131 = vld [vmem:[%s1130] sm:$0xf]
        %v1132 = vld [vmem:[%s1130 + $0x4] sm:$0xf]
        %v1135 = vunpack.c.l.b16 %v1131
        %v1136 = vunpack.c.l.b16 %v1132
        %v1137 = vpack.c.b16 %v1136, %v1135
        %1138 = vrot.lane.b32.xlu0 %v343, 74
        %v1139 = vpop.permute.xlu0 %1138
        %1140 = vrot.lane.b32.xlu0 %v344, 74
        %v1141 = vpop.permute.xlu0 %1140
        %1142 = vrot.lane.b32.xlu0 %v345, 74
        %v1143 = vpop.permute.xlu0 %1142
        %vm1144 = vcmask 605184
        %v1145 = vsel %vm1144, %v1139, %v1141
        %v1146 = vsel %vm1144, %v1141, %v1143
        %v1151 = vsel %vm358, %v1137, 0
        %1153 = vmatprep.subr.bf16.mxu0 0
        %1154 = vmatpush1.bf16.msra.mxu0 0
        %1155 = vmatprep.subr.bf16.mxu0 0
        %1156 = vmatpush1.bf16.msra.mxu0 0
        %1157 = vmatprep.subr.bf16.mxu0 0
        %1158 = vmatpush1.bf16.msra.mxu0 0
        %1159 = vmatprep.subr.bf16.mxu0 0
        %1160 = vmatpush1.bf16.msra.mxu0 0
        %1161 = vmatprep.subr.bf16.mxu0 0
        %1162 = vmatpush1.bf16.msra.mxu0 0
        %1163 = vmatprep.subr.bf16.mxu0 0
        %1164 = vmatpush1.bf16.msra.mxu0 0
        %1165 = vmatprep.subr.bf16.mxu0 0
        %1166 = vmatpush1.bf16.msra.mxu0 0
        %1167 = vmatprep.subr.bf16.mxu0 %v1146
        %1168 = vmatpush1.bf16.msra.mxu0 %v1145
        %1169 = vmatprep.subr.bf16.mxu0 0
        %1170 = vmatpush2.bf16.msra.mxu0 0
        %1171 = vmatprep.subr.bf16.mxu0 0
        %1172 = vmatpush2.bf16.msra.mxu0 0
        %1173 = vmatprep.subr.bf16.mxu0 0
        %1174 = vmatpush2.bf16.msra.mxu0 0
        %1175 = vmatprep.subr.bf16.mxu0 0
        %1176 = vmatpush2.bf16.msra.mxu0 0
        %1177 = vmatprep.subr.bf16.mxu0 0
        %1178 = vmatpush2.bf16.msra.mxu0 0
        %1179 = vmatprep.subr.bf16.mxu0 0
        %1180 = vmatpush2.bf16.msra.mxu0 0
        %1181 = vmatprep.subr.bf16.mxu0 0
        %1182 = vmatpush2.bf16.msra.mxu0 0
        %1183 = vmatprep.subr.bf16.mxu0 0
        %1184 = vmatpush2.bf16.msra.mxu0 0
        %1185 = vmatprep.mubr.bf16.mxu0 0
        %1186 = vmatmul.mubr.bf16.gmra.mxu0 %v1151
        %v1187 = vpop.f32.mrf.mxu0
        %v1188 = vadd.f32 0.0, %v1187
        %v1189 = vpop.f32.mrf.mxu0
        %v1190 = vadd.f32 0.0, %v1189
        %v1191 = vpop.f32.mrf.mxu0
        %v1192 = vadd.f32 0.0, %v1191
        %v1193 = vpop.f32.mrf.mxu0
        %v1194 = vadd.f32 0.0, %v1193
        %1195 = vdwg.mxu0
        %1196 = vmatprep.subr.bf16.mxu0 0
        %1197 = vmatpush1.bf16.msra.mxu0 0
        %1198 = vmatprep.subr.bf16.mxu0 0
        %1199 = vmatpush1.bf16.msra.mxu0 0
        %1200 = vmatprep.subr.bf16.mxu0 0
        %1201 = vmatpush1.bf16.msra.mxu0 0
        %1202 = vmatprep.subr.bf16.mxu0 0
        %1203 = vmatpush1.bf16.msra.mxu0 0
        %1204 = vmatprep.subr.bf16.mxu0 0
        %1205 = vmatpush1.bf16.msra.mxu0 0
        %1206 = vmatprep.subr.bf16.mxu0 0
        %1207 = vmatpush1.bf16.msra.mxu0 0
        %1208 = vmatprep.subr.bf16.mxu0 0
        %1209 = vmatpush1.bf16.msra.mxu0 0
        %1210 = vmatprep.subr.bf16.mxu0 0
        %1211 = vmatpush1.bf16.msra.mxu0 %v1143
        %1212 = vmatprep.subr.bf16.mxu0 0
        %1213 = vmatpush2.bf16.msra.mxu0 0
        %1214 = vmatprep.subr.bf16.mxu0 0
        %1215 = vmatpush2.bf16.msra.mxu0 0
        %1216 = vmatprep.subr.bf16.mxu0 0
        %1217 = vmatpush2.bf16.msra.mxu0 0
        %1218 = vmatprep.subr.bf16.mxu0 0
        %1219 = vmatpush2.bf16.msra.mxu0 0
        %1220 = vmatprep.subr.bf16.mxu0 0
        %1221 = vmatpush2.bf16.msra.mxu0 0
        %1222 = vmatprep.subr.bf16.mxu0 0
        %1223 = vmatpush2.bf16.msra.mxu0 0
        %1224 = vmatprep.subr.bf16.mxu0 0
        %1225 = vmatpush2.bf16.msra.mxu0 0
        %1226 = vmatprep.subr.bf16.mxu0 0
        %1227 = vmatpush2.bf16.msra.mxu0 0
        %1228 = vmatprep.mubr.bf16.mxu0 0
        %1229 = vmatmul.mubr.bf16.gmra.mxu0 %v1151
        %v1230 = vpop.f32.mrf.mxu0
        %v1231 = vadd.f32 0.0, %v1230
        %v1232 = vpop.f32.mrf.mxu0
        %v1233 = vpop.f32.mrf.mxu0
        %v1234 = vadd.f32 0.0, %v1233
        %v1235 = vpop.f32.mrf.mxu0
        %1236 = vdwg.mxu0
        %v1237 = vadd.f32 %v1124, %v1188
        %v1238 = vadd.f32 %v1125, %v1190
        %v1239 = vadd.f32 %v1126, %v1231
        %v1240 = vadd.f32 %v1127, %v1192
        %v1241 = vadd.f32 %v1128, %v1194
        %v1242 = vadd.f32 %v1129, %v1234
        %s1243 = scalar_lea.vmem [#allocation6], 64
        %v1244 = vld [vmem:[%s1243] sm:$0xf]
        %v1245 = vld [vmem:[%s1243 + $0x4] sm:$0xf]
        %v1248 = vunpack.c.l.b16 %v1244
        %v1249 = vunpack.c.l.b16 %v1245
        %v1250 = vpack.c.b16 %v1249, %v1248
        %1251 = vrot.lane.b32.xlu0 %v343, 73
        %v1252 = vpop.permute.xlu0 %1251
        %1253 = vrot.lane.b32.xlu0 %v344, 73
        %v1254 = vpop.permute.xlu0 %1253
        %1255 = vrot.lane.b32.xlu0 %v345, 73
        %v1256 = vpop.permute.xlu0 %1255
        %vm1257 = vcmask 596992
        %v1258 = vsel %vm1257, %v1252, %v1254
        %v1259 = vsel %vm1257, %v1254, %v1256
        %v1264 = vsel %vm358, %v1250, 0
        %1266 = vmatprep.subr.bf16.mxu0 0
        %1267 = vmatpush1.bf16.msra.mxu0 0
        %1268 = vmatprep.subr.bf16.mxu0 0
        %1269 = vmatpush1.bf16.msra.mxu0 0
        %1270 = vmatprep.subr.bf16.mxu0 0
        %1271 = vmatpush1.bf16.msra.mxu0 0
        %1272 = vmatprep.subr.bf16.mxu0 0
        %1273 = vmatpush1.bf16.msra.mxu0 0
        %1274 = vmatprep.subr.bf16.mxu0 0
        %1275 = vmatpush1.bf16.msra.mxu0 0
        %1276 = vmatprep.subr.bf16.mxu0 0
        %1277 = vmatpush1.bf16.msra.mxu0 0
        %1278 = vmatprep.subr.bf16.mxu0 0
        %1279 = vmatpush1.bf16.msra.mxu0 0
        %1280 = vmatprep.subr.bf16.mxu0 %v1259
        %1281 = vmatpush1.bf16.msra.mxu0 %v1258
        %1282 = vmatprep.subr.bf16.mxu0 0
        %1283 = vmatpush2.bf16.msra.mxu0 0
        %1284 = vmatprep.subr.bf16.mxu0 0
        %1285 = vmatpush2.bf16.msra.mxu0 0
        %1286 = vmatprep.subr.bf16.mxu0 0
        %1287 = vmatpush2.bf16.msra.mxu0 0
        %1288 = vmatprep.subr.bf16.mxu0 0
        %1289 = vmatpush2.bf16.msra.mxu0 0
        %1290 = vmatprep.subr.bf16.mxu0 0
        %1291 = vmatpush2.bf16.msra.mxu0 0
        %1292 = vmatprep.subr.bf16.mxu0 0
        %1293 = vmatpush2.bf16.msra.mxu0 0
        %1294 = vmatprep.subr.bf16.mxu0 0
        %1295 = vmatpush2.bf16.msra.mxu0 0
        %1296 = vmatprep.subr.bf16.mxu0 0
        %1297 = vmatpush2.bf16.msra.mxu0 0
        %1298 = vmatprep.mubr.bf16.mxu0 0
        %1299 = vmatmul.mubr.bf16.gmra.mxu0 %v1264
        %v1300 = vpop.f32.mrf.mxu0
        %v1301 = vadd.f32 0.0, %v1300
        %v1302 = vpop.f32.mrf.mxu0
        %v1303 = vadd.f32 0.0, %v1302
        %v1304 = vpop.f32.mrf.mxu0
        %v1305 = vadd.f32 0.0, %v1304
        %v1306 = vpop.f32.mrf.mxu0
        %v1307 = vadd.f32 0.0, %v1306
        %1308 = vdwg.mxu0
        %1309 = vmatprep.subr.bf16.mxu0 0
        %1310 = vmatpush1.bf16.msra.mxu0 0
        %1311 = vmatprep.subr.bf16.mxu0 0
        %1312 = vmatpush1.bf16.msra.mxu0 0
        %1313 = vmatprep.subr.bf16.mxu0 0
        %1314 = vmatpush1.bf16.msra.mxu0 0
        %1315 = vmatprep.subr.bf16.mxu0 0
        %1316 = vmatpush1.bf16.msra.mxu0 0
        %1317 = vmatprep.subr.bf16.mxu0 0
        %1318 = vmatpush1.bf16.msra.mxu0 0
        %1319 = vmatprep.subr.bf16.mxu0 0
        %1320 = vmatpush1.bf16.msra.mxu0 0
        %1321 = vmatprep.subr.bf16.mxu0 0
        %1322 = vmatpush1.bf16.msra.mxu0 0
        %1323 = vmatprep.subr.bf16.mxu0 0
        %1324 = vmatpush1.bf16.msra.mxu0 %v1256
        %1325 = vmatprep.subr.bf16.mxu0 0
        %1326 = vmatpush2.bf16.msra.mxu0 0
        %1327 = vmatprep.subr.bf16.mxu0 0
        %1328 = vmatpush2.bf16.msra.mxu0 0
        %1329 = vmatprep.subr.bf16.mxu0 0
        %1330 = vmatpush2.bf16.msra.mxu0 0
        %1331 = vmatprep.subr.bf16.mxu0 0
        %1332 = vmatpush2.bf16.msra.mxu0 0
        %1333 = vmatprep.subr.bf16.mxu0 0
        %1334 = vmatpush2.bf16.msra.mxu0 0
        %1335 = vmatprep.subr.bf16.mxu0 0
        %1336 = vmatpush2.bf16.msra.mxu0 0
        %1337 = vmatprep.subr.bf16.mxu0 0
        %1338 = vmatpush2.bf16.msra.mxu0 0
        %1339 = vmatprep.subr.bf16.mxu0 0
        %1340 = vmatpush2.bf16.msra.mxu0 0
        %1341 = vmatprep.mubr.bf16.mxu0 0
        %1342 = vmatmul.mubr.bf16.gmra.mxu0 %v1264
        %v1343 = vpop.f32.mrf.mxu0
        %v1344 = vadd.f32 0.0, %v1343
        %v1345 = vpop.f32.mrf.mxu0
        %v1346 = vpop.f32.mrf.mxu0
        %v1347 = vadd.f32 0.0, %v1346
        %v1348 = vpop.f32.mrf.mxu0
        %1349 = vdwg.mxu0
        %v1350 = vadd.f32 %v1237, %v1301
        %v1351 = vadd.f32 %v1238, %v1303
        %v1352 = vadd.f32 %v1239, %v1344
        %v1353 = vadd.f32 %v1240, %v1305
        %v1354 = vadd.f32 %v1241, %v1307
        %v1355 = vadd.f32 %v1242, %v1347
        %v1356 = vmul.f32 %v1350, 0.01
        %v1357 = vmul.f32 %v1351, 0.01
        %v1358 = vmul.f32 %v1352, 0.01
        %v1359 = vmul.f32 %v1353, 0.01
        %v1360 = vmul.f32 %v1354, 0.01
        %v1361 = vmul.f32 %v1355, 0.01
        %v1362 = vmax.f32 %v1350, %v1356
        %v1363 = vmax.f32 %v1351, %v1357
        %v1364 = vmax.f32 %v1352, %v1358
        %v1365 = vmax.f32 %v1353, %v1359
        %v1366 = vmax.f32 %v1354, %v1360
        %v1367 = vmax.f32 %v1355, %v1361
        %v1369 = vlaneseq
        %v1370 = vshrl.u32 %v1369, 7
        %v1371 = vsub.s32 0, %v1370
        %v1372 = vrot.slane %v309, %v1371
        %v1373 = vlaneseq
        %v1374 = vshrl.u32 %v1373, 7
        %v1375 = vsub.s32 1, %v1374
        %v1376 = vrot.slane %v309, %v1375
        %v1377 = vlaneseq
        %v1378 = vshrl.u32 %v1377, 7
        %v1379 = vsub.s32 2, %v1378
        %v1380 = vrot.slane %v309, %v1379
        %v1384 = vmul.f32 %v1362, %v1372
        %v1385 = vmul.f32 %v1363, %v1376
        %v1386 = vmul.f32 %v1364, %v1380
        %v1387 = vmul.f32 %v1365, %v1372
        %v1388 = vmul.f32 %v1366, %v1376
        %v1389 = vmul.f32 %v1367, %v1380
        %v1390 = vpack.c.bf16 %v1387, %v1384
        %v1391 = vpack.c.bf16 %v1388, %v1385
        %v1392 = vpack.c.bf16 %v1389, %v1386
        %v1396 = vunpack.c.l.b16 %v1390
        %v1397 = vunpack.c.l.b16 %v1391
        %v1398 = vunpack.c.l.b16 %v1392
        %v1399 = vunpack.c.h.b16 %v1390
        %v1400 = vunpack.c.h.b16 %v1391
        %v1401 = vunpack.c.h.b16 %v1392
        %v1402 = vpack.c.b16 %v1397, %v1396
        %v1403 = vpack.c.b16 %v1398, %v1398
        %v1404 = vpack.c.b16 %v1400, %v1399
        %v1405 = vpack.c.b16 %v1401, %v1401
        %1410 = vst [vmem:[#allocation2 + $0x4] sm:$0xff] %v1402
        %vm1411 = vcmask 551936
        %1412 = vst.msk [vmem:[#allocation2 + $0xc] sm:$0xf] %vm1411, %v1403
        %1413 = vst [vmem:[#allocation2 + $0x14] sm:$0xff] %v1404
        %1414 = vst.msk [vmem:[#allocation2 + $0x1c] sm:$0xf] %vm1411, %v1405
        %v1415 = vld [vmem:[%s4] sm:$0xff]
        %v1416 = vld [vmem:[%s4 + $0x8] sm:$0xff]
        %1418 = vset.pattern.permute.xlu0 0
        %1419 = vperm.xlu0 %1418, %v1415
        %v1420 = vpop.permute.xlu0 %1419
        %1423 = vset.pattern.permute.xlu0 0
        %1424 = vperm.xlu0 %1423, %v1416
        %v1425 = vpop.permute.xlu0 %1424
        %v1427 = vld [vmem:[#allocation8] sm:$0xf]
        %v1428 = vld [vmem:[#allocation8 + $0x4] sm:$0xf]
        %v1429 = vld [vmem:[#allocation2] sm:$0xff]
        %v1430 = vld [vmem:[#allocation2 + $0x8] sm:$0xff]
        %v1431 = vld [vmem:[#allocation2 + $0x10] sm:$0xff]
        %v1432 = vld [vmem:[#allocation2 + $0x18] sm:$0xff]
        %v1435 = vunpack.c.l.b16 %v1427
        %v1436 = vunpack.c.l.b16 %v1428
        %v1437 = vpack.c.b16 %v1436, %v1435
        %v1442 = vunpack.c.l.b16 %v1429
        %v1443 = vunpack.c.h.b16 %v1429
        %v1444 = vunpack.c.l.b16 %v1430
        %v1445 = vunpack.c.h.b16 %v1430
        %v1446 = vunpack.c.l.b16 %v1431
        %v1447 = vunpack.c.h.b16 %v1431
        %v1448 = vunpack.c.l.b16 %v1432
        %v1449 = vunpack.c.h.b16 %v1432
        %v1450 = vpack.c.b16 %v1446, %v1442
        %v1451 = vpack.c.b16 %v1447, %v1443
        %v1452 = vpack.c.b16 %v1448, %v1444
        %v1453 = vpack.c.b16 %v1449, %v1445
        %1454 = vrot.lane.b32.xlu0 %v1450, 19
        %v1455 = vpop.permute.xlu0 %1454
        %1456 = vrot.lane.b32.xlu0 %v1451, 19
        %v1457 = vpop.permute.xlu0 %1456
        %1458 = vrot.lane.b32.xlu0 %v1452, 19
        %v1459 = vpop.permute.xlu0 %1458
        %1460 = vrot.lane.b32.xlu0 %v1453, 19
        %v1461 = vpop.permute.xlu0 %1460
        %vm1462 = vcmask 154624
        %v1463 = vsel %vm1462, %v1455, %v1457
        %v1464 = vsel %vm1462, %v1457, %v1459
        %v1465 = vsel %vm1462, %v1459, %v1461
        %v1470 = vsel %vm358, %v1437, 0
        %1472 = vmatprep.subr.bf16.mxu0 0
        %1473 = vmatpush1.bf16.msra.mxu0 0
        %1474 = vmatprep.subr.bf16.mxu0 0
        %1475 = vmatpush1.bf16.msra.mxu0 0
        %1476 = vmatprep.subr.bf16.mxu0 0
        %1477 = vmatpush1.bf16.msra.mxu0 0
        %1478 = vmatprep.subr.bf16.mxu0 0
        %1479 = vmatpush1.bf16.msra.mxu0 0
        %1480 = vmatprep.subr.bf16.mxu0 0
        %1481 = vmatpush1.bf16.msra.mxu0 0
        %1482 = vmatprep.subr.bf16.mxu0 0
        %1483 = vmatpush1.bf16.msra.mxu0 0
        %1484 = vmatprep.subr.bf16.mxu0 0
        %1485 = vmatpush1.bf16.msra.mxu0 0
        %1486 = vmatprep.subr.bf16.mxu0 %v1464
        %1487 = vmatpush1.bf16.msra.mxu0 %v1463
        %1488 = vmatprep.subr.bf16.mxu0 0
        %1489 = vmatpush2.bf16.msra.mxu0 0
        %1490 = vmatprep.subr.bf16.mxu0 0
        %1491 = vmatpush2.bf16.msra.mxu0 0
        %1492 = vmatprep.subr.bf16.mxu0 0
        %1493 = vmatpush2.bf16.msra.mxu0 0
        %1494 = vmatprep.subr.bf16.mxu0 0
        %1495 = vmatpush2.bf16.msra.mxu0 0
        %1496 = vmatprep.subr.bf16.mxu0 0
        %1497 = vmatpush2.bf16.msra.mxu0 0
        %1498 = vmatprep.subr.bf16.mxu0 0
        %1499 = vmatpush2.bf16.msra.mxu0 0
        %1500 = vmatprep.subr.bf16.mxu0 0
        %1501 = vmatpush2.bf16.msra.mxu0 0
        %1502 = vmatprep.subr.bf16.mxu0 0
        %1503 = vmatpush2.bf16.msra.mxu0 0
        %1504 = vmatprep.mubr.bf16.mxu0 0
        %1505 = vmatmul.mubr.bf16.gmra.mxu0 %v1470
        %v1506 = vpop.f32.mrf.mxu0
        %v1507 = vadd.f32 0.0, %v1506
        %v1508 = vpop.f32.mrf.mxu0
        %v1509 = vadd.f32 0.0, %v1508
        %v1510 = vpop.f32.mrf.mxu0
        %v1511 = vadd.f32 0.0, %v1510
        %v1512 = vpop.f32.mrf.mxu0
        %v1513 = vadd.f32 0.0, %v1512
        %1514 = vdwg.mxu0
        %1515 = vmatprep.subr.bf16.mxu0 0
        %1516 = vmatpush1.bf16.msra.mxu0 0
        %1517 = vmatprep.subr.bf16.mxu0 0
        %1518 = vmatpush1.bf16.msra.mxu0 0
        %1519 = vmatprep.subr.bf16.mxu0 0
        %1520 = vmatpush1.bf16.msra.mxu0 0
        %1521 = vmatprep.subr.bf16.mxu0 0
        %1522 = vmatpush1.bf16.msra.mxu0 0
        %1523 = vmatprep.subr.bf16.mxu0 0
        %1524 = vmatpush1.bf16.msra.mxu0 0
        %1525 = vmatprep.subr.bf16.mxu0 0
        %1526 = vmatpush1.bf16.msra.mxu0 0
        %1527 = vmatprep.subr.bf16.mxu0 0
        %1528 = vmatpush1.bf16.msra.mxu0 0
        %1529 = vmatprep.subr.bf16.mxu0 0
        %1530 = vmatpush1.bf16.msra.mxu0 %v1465
        %1531 = vmatprep.subr.bf16.mxu0 0
        %1532 = vmatpush2.bf16.msra.mxu0 0
        %1533 = vmatprep.subr.bf16.mxu0 0
        %1534 = vmatpush2.bf16.msra.mxu0 0
        %1535 = vmatprep.subr.bf16.mxu0 0
        %1536 = vmatpush2.bf16.msra.mxu0 0
        %1537 = vmatprep.subr.bf16.mxu0 0
        %1538 = vmatpush2.bf16.msra.mxu0 0
        %1539 = vmatprep.subr.bf16.mxu0 0
        %1540 = vmatpush2.bf16.msra.mxu0 0
        %1541 = vmatprep.subr.bf16.mxu0 0
        %1542 = vmatpush2.bf16.msra.mxu0 0
        %1543 = vmatprep.subr.bf16.mxu0 0
        %1544 = vmatpush2.bf16.msra.mxu0 0
        %1545 = vmatprep.subr.bf16.mxu0 0
        %1546 = vmatpush2.bf16.msra.mxu0 0
        %1547 = vmatprep.mubr.bf16.mxu0 0
        %1548 = vmatmul.mubr.bf16.gmra.mxu0 %v1470
        %v1549 = vpop.f32.mrf.mxu0
        %v1550 = vadd.f32 0.0, %v1549
        %v1551 = vpop.f32.mrf.mxu0
        %v1552 = vpop.f32.mrf.mxu0
        %v1553 = vadd.f32 0.0, %v1552
        %v1554 = vpop.f32.mrf.mxu0
        %1555 = vdwg.mxu0
        %v1556 = vadd.f32 %v1420, %v1507
        %v1557 = vadd.f32 %v1420, %v1509
        %v1558 = vadd.f32 %v1420, %v1550
        %v1559 = vadd.f32 %v1425, %v1511
        %v1560 = vadd.f32 %v1425, %v1513
        %v1561 = vadd.f32 %v1425, %v1553
        %s1562 = scalar_lea.vmem [#allocation8], 8
        %v1563 = vld [vmem:[%s1562] sm:$0xf]
        %v1564 = vld [vmem:[%s1562 + $0x4] sm:$0xf]
        %v1567 = vunpack.c.l.b16 %v1563
        %v1568 = vunpack.c.l.b16 %v1564
        %v1569 = vpack.c.b16 %v1568, %v1567
        %1570 = vrot.lane.b32.xlu0 %v1450, 18
        %v1571 = vpop.permute.xlu0 %1570
        %1572 = vrot.lane.b32.xlu0 %v1451, 18
        %v1573 = vpop.permute.xlu0 %1572
        %1574 = vrot.lane.b32.xlu0 %v1452, 18
        %v1575 = vpop.permute.xlu0 %1574
        %1576 = vrot.lane.b32.xlu0 %v1453, 18
        %v1577 = vpop.permute.xlu0 %1576
        %vm1578 = vcmask 146432
        %v1579 = vsel %vm1578, %v1571, %v1573
        %v1580 = vsel %vm1578, %v1573, %v1575
        %v1581 = vsel %vm1578, %v1575, %v1577
        %v1586 = vsel %vm358, %v1569, 0
        %1588 = vmatprep.subr.bf16.mxu0 0
        %1589 = vmatpush1.bf16.msra.mxu0 0
        %1590 = vmatprep.subr.bf16.mxu0 0
        %1591 = vmatpush1.bf16.msra.mxu0 0
        %1592 = vmatprep.subr.bf16.mxu0 0
        %1593 = vmatpush1.bf16.msra.mxu0 0
        %1594 = vmatprep.subr.bf16.mxu0 0
        %1595 = vmatpush1.bf16.msra.mxu0 0
        %1596 = vmatprep.subr.bf16.mxu0 0
        %1597 = vmatpush1.bf16.msra.mxu0 0
        %1598 = vmatprep.subr.bf16.mxu0 0
        %1599 = vmatpush1.bf16.msra.mxu0 0
        %1600 = vmatprep.subr.bf16.mxu0 0
        %1601 = vmatpush1.bf16.msra.mxu0 0
        %1602 = vmatprep.subr.bf16.mxu0 %v1580
        %1603 = vmatpush1.bf16.msra.mxu0 %v1579
        %1604 = vmatprep.subr.bf16.mxu0 0
        %1605 = vmatpush2.bf16.msra.mxu0 0
        %1606 = vmatprep.subr.bf16.mxu0 0
        %1607 = vmatpush2.bf16.msra.mxu0 0
        %1608 = vmatprep.subr.bf16.mxu0 0
        %1609 = vmatpush2.bf16.msra.mxu0 0
        %1610 = vmatprep.subr.bf16.mxu0 0
        %1611 = vmatpush2.bf16.msra.mxu0 0
        %1612 = vmatprep.subr.bf16.mxu0 0
        %1613 = vmatpush2.bf16.msra.mxu0 0
        %1614 = vmatprep.subr.bf16.mxu0 0
        %1615 = vmatpush2.bf16.msra.mxu0 0
        %1616 = vmatprep.subr.bf16.mxu0 0
        %1617 = vmatpush2.bf16.msra.mxu0 0
        %1618 = vmatprep.subr.bf16.mxu0 0
        %1619 = vmatpush2.bf16.msra.mxu0 0
        %1620 = vmatprep.mubr.bf16.mxu0 0
        %1621 = vmatmul.mubr.bf16.gmra.mxu0 %v1586
        %v1622 = vpop.f32.mrf.mxu0
        %v1623 = vadd.f32 0.0, %v1622
        %v1624 = vpop.f32.mrf.mxu0
        %v1625 = vadd.f32 0.0, %v1624
        %v1626 = vpop.f32.mrf.mxu0
        %v1627 = vadd.f32 0.0, %v1626
        %v1628 = vpop.f32.mrf.mxu0
        %v1629 = vadd.f32 0.0, %v1628
        %1630 = vdwg.mxu0
        %1631 = vmatprep.subr.bf16.mxu0 0
        %1632 = vmatpush1.bf16.msra.mxu0 0
        %1633 = vmatprep.subr.bf16.mxu0 0
        %1634 = vmatpush1.bf16.msra.mxu0 0
        %1635 = vmatprep.subr.bf16.mxu0 0
        %1636 = vmatpush1.bf16.msra.mxu0 0
        %1637 = vmatprep.subr.bf16.mxu0 0
        %1638 = vmatpush1.bf16.msra.mxu0 0
        %1639 = vmatprep.subr.bf16.mxu0 0
        %1640 = vmatpush1.bf16.msra.mxu0 0
        %1641 = vmatprep.subr.bf16.mxu0 0
        %1642 = vmatpush1.bf16.msra.mxu0 0
        %1643 = vmatprep.subr.bf16.mxu0 0
        %1644 = vmatpush1.bf16.msra.mxu0 0
        %1645 = vmatprep.subr.bf16.mxu0 0
        %1646 = vmatpush1.bf16.msra.mxu0 %v1581
        %1647 = vmatprep.subr.bf16.mxu0 0
        %1648 = vmatpush2.bf16.msra.mxu0 0
        %1649 = vmatprep.subr.bf16.mxu0 0
        %1650 = vmatpush2.bf16.msra.mxu0 0
        %1651 = vmatprep.subr.bf16.mxu0 0
        %1652 = vmatpush2.bf16.msra.mxu0 0
        %1653 = vmatprep.subr.bf16.mxu0 0
        %1654 = vmatpush2.bf16.msra.mxu0 0
        %1655 = vmatprep.subr.bf16.mxu0 0
        %1656 = vmatpush2.bf16.msra.mxu0 0
        %1657 = vmatprep.subr.bf16.mxu0 0
        %1658 = vmatpush2.bf16.msra.mxu0 0
        %1659 = vmatprep.subr.bf16.mxu0 0
        %1660 = vmatpush2.bf16.msra.mxu0 0
        %1661 = vmatprep.subr.bf16.mxu0 0
        %1662 = vmatpush2.bf16.msra.mxu0 0
        %1663 = vmatprep.mubr.bf16.mxu0 0
        %1664 = vmatmul.mubr.bf16.gmra.mxu0 %v1586
        %v1665 = vpop.f32.mrf.mxu0
        %v1666 = vadd.f32 0.0, %v1665
        %v1667 = vpop.f32.mrf.mxu0
        %v1668 = vpop.f32.mrf.mxu0
        %v1669 = vadd.f32 0.0, %v1668
        %v1670 = vpop.f32.mrf.mxu0
        %1671 = vdwg.mxu0
        %v1672 = vadd.f32 %v1556, %v1623
        %v1673 = vadd.f32 %v1557, %v1625
        %v1674 = vadd.f32 %v1558, %v1666
        %v1675 = vadd.f32 %v1559, %v1627
        %v1676 = vadd.f32 %v1560, %v1629
        %v1677 = vadd.f32 %v1561, %v1669
        %s1678 = scalar_lea.vmem [#allocation8], 16
        %v1679 = vld [vmem:[%s1678] sm:$0xf]
        %v1680 = vld [vmem:[%s1678 + $0x4] sm:$0xf]
        %v1683 = vunpack.c.l.b16 %v1679
        %v1684 = vunpack.c.l.b16 %v1680
        %v1685 = vpack.c.b16 %v1684, %v1683
        %1686 = vrot.lane.b32.xlu0 %v1450, 17
        %v1687 = vpop.permute.xlu0 %1686
        %1688 = vrot.lane.b32.xlu0 %v1451, 17
        %v1689 = vpop.permute.xlu0 %1688
        %1690 = vrot.lane.b32.xlu0 %v1452, 17
        %v1691 = vpop.permute.xlu0 %1690
        %1692 = vrot.lane.b32.xlu0 %v1453, 17
        %v1693 = vpop.permute.xlu0 %1692
        %vm1694 = vcmask 138240
        %v1695 = vsel %vm1694, %v1687, %v1689
        %v1696 = vsel %vm1694, %v1689, %v1691
        %v1697 = vsel %vm1694, %v1691, %v1693
        %v1702 = vsel %vm358, %v1685, 0
        %1704 = vmatprep.subr.bf16.mxu0 0
        %1705 = vmatpush1.bf16.msra.mxu0 0
        %1706 = vmatprep.subr.bf16.mxu0 0
        %1707 = vmatpush1.bf16.msra.mxu0 0
        %1708 = vmatprep.subr.bf16.mxu0 0
        %1709 = vmatpush1.bf16.msra.mxu0 0
        %1710 = vmatprep.subr.bf16.mxu0 0
        %1711 = vmatpush1.bf16.msra.mxu0 0
        %1712 = vmatprep.subr.bf16.mxu0 0
        %1713 = vmatpush1.bf16.msra.mxu0 0
        %1714 = vmatprep.subr.bf16.mxu0 0
        %1715 = vmatpush1.bf16.msra.mxu0 0
        %1716 = vmatprep.subr.bf16.mxu0 0
        %1717 = vmatpush1.bf16.msra.mxu0 0
        %1718 = vmatprep.subr.bf16.mxu0 %v1696
        %1719 = vmatpush1.bf16.msra.mxu0 %v1695
        %1720 = vmatprep.subr.bf16.mxu0 0
        %1721 = vmatpush2.bf16.msra.mxu0 0
        %1722 = vmatprep.subr.bf16.mxu0 0
        %1723 = vmatpush2.bf16.msra.mxu0 0
        %1724 = vmatprep.subr.bf16.mxu0 0
        %1725 = vmatpush2.bf16.msra.mxu0 0
        %1726 = vmatprep.subr.bf16.mxu0 0
        %1727 = vmatpush2.bf16.msra.mxu0 0
        %1728 = vmatprep.subr.bf16.mxu0 0
        %1729 = vmatpush2.bf16.msra.mxu0 0
        %1730 = vmatprep.subr.bf16.mxu0 0
        %1731 = vmatpush2.bf16.msra.mxu0 0
        %1732 = vmatprep.subr.bf16.mxu0 0
        %1733 = vmatpush2.bf16.msra.mxu0 0
        %1734 = vmatprep.subr.bf16.mxu0 0
        %1735 = vmatpush2.bf16.msra.mxu0 0
        %1736 = vmatprep.mubr.bf16.mxu0 0
        %1737 = vmatmul.mubr.bf16.gmra.mxu0 %v1702
        %v1738 = vpop.f32.mrf.mxu0
        %v1739 = vadd.f32 0.0, %v1738
        %v1740 = vpop.f32.mrf.mxu0
        %v1741 = vadd.f32 0.0, %v1740
        %v1742 = vpop.f32.mrf.mxu0
        %v1743 = vadd.f32 0.0, %v1742
        %v1744 = vpop.f32.mrf.mxu0
        %v1745 = vadd.f32 0.0, %v1744
        %1746 = vdwg.mxu0
        %1747 = vmatprep.subr.bf16.mxu0 0
        %1748 = vmatpush1.bf16.msra.mxu0 0
        %1749 = vmatprep.subr.bf16.mxu0 0
        %1750 = vmatpush1.bf16.msra.mxu0 0
        %1751 = vmatprep.subr.bf16.mxu0 0
        %1752 = vmatpush1.bf16.msra.mxu0 0
        %1753 = vmatprep.subr.bf16.mxu0 0
        %1754 = vmatpush1.bf16.msra.mxu0 0
        %1755 = vmatprep.subr.bf16.mxu0 0
        %1756 = vmatpush1.bf16.msra.mxu0 0
        %1757 = vmatprep.subr.bf16.mxu0 0
        %1758 = vmatpush1.bf16.msra.mxu0 0
        %1759 = vmatprep.subr.bf16.mxu0 0
        %1760 = vmatpush1.bf16.msra.mxu0 0
        %1761 = vmatprep.subr.bf16.mxu0 0
        %1762 = vmatpush1.bf16.msra.mxu0 %v1697
        %1763 = vmatprep.subr.bf16.mxu0 0
        %1764 = vmatpush2.bf16.msra.mxu0 0
        %1765 = vmatprep.subr.bf16.mxu0 0
        %1766 = vmatpush2.bf16.msra.mxu0 0
        %1767 = vmatprep.subr.bf16.mxu0 0
        %1768 = vmatpush2.bf16.msra.mxu0 0
        %1769 = vmatprep.subr.bf16.mxu0 0
        %1770 = vmatpush2.bf16.msra.mxu0 0
        %1771 = vmatprep.subr.bf16.mxu0 0
        %1772 = vmatpush2.bf16.msra.mxu0 0
        %1773 = vmatprep.subr.bf16.mxu0 0
        %1774 = vmatpush2.bf16.msra.mxu0 0
        %1775 = vmatprep.subr.bf16.mxu0 0
        %1776 = vmatpush2.bf16.msra.mxu0 0
        %1777 = vmatprep.subr.bf16.mxu0 0
        %1778 = vmatpush2.bf16.msra.mxu0 0
        %1779 = vmatprep.mubr.bf16.mxu0 0
        %1780 = vmatmul.mubr.bf16.gmra.mxu0 %v1702
        %v1781 = vpop.f32.mrf.mxu0
        %v1782 = vadd.f32 0.0, %v1781
        %v1783 = vpop.f32.mrf.mxu0
        %v1784 = vpop.f32.mrf.mxu0
        %v1785 = vadd.f32 0.0, %v1784
        %v1786 = vpop.f32.mrf.mxu0
        %1787 = vdwg.mxu0
        %v1788 = vadd.f32 %v1672, %v1739
        %v1789 = vadd.f32 %v1673, %v1741
        %v1790 = vadd.f32 %v1674, %v1782
        %v1791 = vadd.f32 %v1675, %v1743
        %v1792 = vadd.f32 %v1676, %v1745
        %v1793 = vadd.f32 %v1677, %v1785
        %s1794 = scalar_lea.vmem [#allocation8], 24
        %v1795 = vld [vmem:[%s1794] sm:$0xf]
        %v1796 = vld [vmem:[%s1794 + $0x4] sm:$0xf]
        %v1799 = vunpack.c.l.b16 %v1795
        %v1800 = vunpack.c.l.b16 %v1796
        %v1801 = vpack.c.b16 %v1800, %v1799
        %1802 = vrot.lane.b32.xlu0 %v1450, 1
        %v1803 = vpop.permute.xlu0 %1802
        %1804 = vrot.lane.b32.xlu0 %v1451, 1
        %v1805 = vpop.permute.xlu0 %1804
        %1806 = vrot.lane.b32.xlu0 %v1452, 1
        %v1807 = vpop.permute.xlu0 %1806
        %1808 = vrot.lane.b32.xlu0 %v1453, 1
        %v1809 = vpop.permute.xlu0 %1808
        %vm1810 = vcmask 7168
        %v1811 = vsel %vm1810, %v1803, %v1805
        %v1812 = vsel %vm1810, %v1805, %v1807
        %v1813 = vsel %vm1810, %v1807, %v1809
        %v1818 = vsel %vm358, %v1801, 0
        %1820 = vmatprep.subr.bf16.mxu0 0
        %1821 = vmatpush1.bf16.msra.mxu0 0
        %1822 = vmatprep.subr.bf16.mxu0 0
        %1823 = vmatpush1.bf16.msra.mxu0 0
        %1824 = vmatprep.subr.bf16.mxu0 0
        %1825 = vmatpush1.bf16.msra.mxu0 0
        %1826 = vmatprep.subr.bf16.mxu0 0
        %1827 = vmatpush1.bf16.msra.mxu0 0
        %1828 = vmatprep.subr.bf16.mxu0 0
        %1829 = vmatpush1.bf16.msra.mxu0 0
        %1830 = vmatprep.subr.bf16.mxu0 0
        %1831 = vmatpush1.bf16.msra.mxu0 0
        %1832 = vmatprep.subr.bf16.mxu0 0
        %1833 = vmatpush1.bf16.msra.mxu0 0
        %1834 = vmatprep.subr.bf16.mxu0 %v1812
        %1835 = vmatpush1.bf16.msra.mxu0 %v1811
        %1836 = vmatprep.subr.bf16.mxu0 0
        %1837 = vmatpush2.bf16.msra.mxu0 0
        %1838 = vmatprep.subr.bf16.mxu0 0
        %1839 = vmatpush2.bf16.msra.mxu0 0
        %1840 = vmatprep.subr.bf16.mxu0 0
        %1841 = vmatpush2.bf16.msra.mxu0 0
        %1842 = vmatprep.subr.bf16.mxu0 0
        %1843 = vmatpush2.bf16.msra.mxu0 0
        %1844 = vmatprep.subr.bf16.mxu0 0
        %1845 = vmatpush2.bf16.msra.mxu0 0
        %1846 = vmatprep.subr.bf16.mxu0 0
        %1847 = vmatpush2.bf16.msra.mxu0 0
        %1848 = vmatprep.subr.bf16.mxu0 0
        %1849 = vmatpush2.bf16.msra.mxu0 0
        %1850 = vmatprep.subr.bf16.mxu0 0
        %1851 = vmatpush2.bf16.msra.mxu0 0
        %1852 = vmatprep.mubr.bf16.mxu0 0
        %1853 = vmatmul.mubr.bf16.gmra.mxu0 %v1818
        %v1854 = vpop.f32.mrf.mxu0
        %v1855 = vadd.f32 0.0, %v1854
        %v1856 = vpop.f32.mrf.mxu0
        %v1857 = vadd.f32 0.0, %v1856
        %v1858 = vpop.f32.mrf.mxu0
        %v1859 = vadd.f32 0.0, %v1858
        %v1860 = vpop.f32.mrf.mxu0
        %v1861 = vadd.f32 0.0, %v1860
        %1862 = vdwg.mxu0
        %1863 = vmatprep.subr.bf16.mxu0 0
        %1864 = vmatpush1.bf16.msra.mxu0 0
        %1865 = vmatprep.subr.bf16.mxu0 0
        %1866 = vmatpush1.bf16.msra.mxu0 0
        %1867 = vmatprep.subr.bf16.mxu0 0
        %1868 = vmatpush1.bf16.msra.mxu0 0
        %1869 = vmatprep.subr.bf16.mxu0 0
        %1870 = vmatpush1.bf16.msra.mxu0 0
        %1871 = vmatprep.subr.bf16.mxu0 0
        %1872 = vmatpush1.bf16.msra.mxu0 0
        %1873 = vmatprep.subr.bf16.mxu0 0
        %1874 = vmatpush1.bf16.msra.mxu0 0
        %1875 = vmatprep.subr.bf16.mxu0 0
        %1876 = vmatpush1.bf16.msra.mxu0 0
        %1877 = vmatprep.subr.bf16.mxu0 0
        %1878 = vmatpush1.bf16.msra.mxu0 %v1813
        %1879 = vmatprep.subr.bf16.mxu0 0
        %1880 = vmatpush2.bf16.msra.mxu0 0
        %1881 = vmatprep.subr.bf16.mxu0 0
        %1882 = vmatpush2.bf16.msra.mxu0 0
        %1883 = vmatprep.subr.bf16.mxu0 0
        %1884 = vmatpush2.bf16.msra.mxu0 0
        %1885 = vmatprep.subr.bf16.mxu0 0
        %1886 = vmatpush2.bf16.msra.mxu0 0
        %1887 = vmatprep.subr.bf16.mxu0 0
        %1888 = vmatpush2.bf16.msra.mxu0 0
        %1889 = vmatprep.subr.bf16.mxu0 0
        %1890 = vmatpush2.bf16.msra.mxu0 0
        %1891 = vmatprep.subr.bf16.mxu0 0
        %1892 = vmatpush2.bf16.msra.mxu0 0
        %1893 = vmatprep.subr.bf16.mxu0 0
        %1894 = vmatpush2.bf16.msra.mxu0 0
        %1895 = vmatprep.mubr.bf16.mxu0 0
        %1896 = vmatmul.mubr.bf16.gmra.mxu0 %v1818
        %v1897 = vpop.f32.mrf.mxu0
        %v1898 = vadd.f32 0.0, %v1897
        %v1899 = vpop.f32.mrf.mxu0
        %v1900 = vpop.f32.mrf.mxu0
        %v1901 = vadd.f32 0.0, %v1900
        %v1902 = vpop.f32.mrf.mxu0
        %1903 = vdwg.mxu0
        %v1904 = vadd.f32 %v1788, %v1855
        %v1905 = vadd.f32 %v1789, %v1857
        %v1906 = vadd.f32 %v1790, %v1898
        %v1907 = vadd.f32 %v1791, %v1859
        %v1908 = vadd.f32 %v1792, %v1861
        %v1909 = vadd.f32 %v1793, %v1901
        %s1910 = scalar_lea.vmem [#allocation8], 32
        %v1911 = vld [vmem:[%s1910] sm:$0xf]
        %v1912 = vld [vmem:[%s1910 + $0x4] sm:$0xf]
        %v1913 = vld [vmem:[#allocation2 + $0x4] sm:$0xff]
        %v1914 = vld [vmem:[#allocation2 + $0xc] sm:$0xf]
        %v1915 = vld [vmem:[#allocation2 + $0x14] sm:$0xff]
        %v1916 = vld [vmem:[#allocation2 + $0x1c] sm:$0xf]
        %v1919 = vunpack.c.l.b16 %v1911
        %v1920 = vunpack.c.l.b16 %v1912
        %v1921 = vpack.c.b16 %v1920, %v1919
        %v1926 = vunpack.c.l.b16 %v1913
        %v1927 = vunpack.c.h.b16 %v1913
        %v1928 = vunpack.c.l.b16 %v1914
        %v1929 = vunpack.c.l.b16 %v1915
        %v1930 = vunpack.c.h.b16 %v1915
        %v1931 = vunpack.c.l.b16 %v1916
        %v1932 = vpack.c.b16 %v1929, %v1926
        %v1933 = vpack.c.b16 %v1930, %v1927
        %v1934 = vpack.c.b16 %v1931, %v1928
        %v1939 = vsel %vm358, %v1921, 0
        %1941 = vmatprep.subr.bf16.mxu0 0
        %1942 = vmatpush1.bf16.msra.mxu0 0
        %1943 = vmatprep.subr.bf16.mxu0 0
        %1944 = vmatpush1.bf16.msra.mxu0 0
        %1945 = vmatprep.subr.bf16.mxu0 0
        %1946 = vmatpush1.bf16.msra.mxu0 0
        %1947 = vmatprep.subr.bf16.mxu0 0
        %1948 = vmatpush1.bf16.msra.mxu0 0
        %1949 = vmatprep.subr.bf16.mxu0 0
        %1950 = vmatpush1.bf16.msra.mxu0 0
        %1951 = vmatprep.subr.bf16.mxu0 0
        %1952 = vmatpush1.bf16.msra.mxu0 0
        %1953 = vmatprep.subr.bf16.mxu0 0
        %1954 = vmatpush1.bf16.msra.mxu0 0
        %1955 = vmatprep.subr.bf16.mxu0 %v1933
        %1956 = vmatpush1.bf16.msra.mxu0 %v1932
        %1957 = vmatprep.subr.bf16.mxu0 0
        %1958 = vmatpush2.bf16.msra.mxu0 0
        %1959 = vmatprep.subr.bf16.mxu0 0
        %1960 = vmatpush2.bf16.msra.mxu0 0
        %1961 = vmatprep.subr.bf16.mxu0 0
        %1962 = vmatpush2.bf16.msra.mxu0 0
        %1963 = vmatprep.subr.bf16.mxu0 0
        %1964 = vmatpush2.bf16.msra.mxu0 0
        %1965 = vmatprep.subr.bf16.mxu0 0
        %1966 = vmatpush2.bf16.msra.mxu0 0
        %1967 = vmatprep.subr.bf16.mxu0 0
        %1968 = vmatpush2.bf16.msra.mxu0 0
        %1969 = vmatprep.subr.bf16.mxu0 0
        %1970 = vmatpush2.bf16.msra.mxu0 0
        %1971 = vmatprep.subr.bf16.mxu0 0
        %1972 = vmatpush2.bf16.msra.mxu0 0
        %1973 = vmatprep.mubr.bf16.mxu0 0
        %1974 = vmatmul.mubr.bf16.gmra.mxu0 %v1939
        %v1975 = vpop.f32.mrf.mxu0
        %v1976 = vadd.f32 0.0, %v1975
        %v1977 = vpop.f32.mrf.mxu0
        %v1978 = vadd.f32 0.0, %v1977
        %v1979 = vpop.f32.mrf.mxu0
        %v1980 = vadd.f32 0.0, %v1979
        %v1981 = vpop.f32.mrf.mxu0
        %v1982 = vadd.f32 0.0, %v1981
        %1983 = vdwg.mxu0
        %1984 = vmatprep.subr.bf16.mxu0 0
        %1985 = vmatpush1.bf16.msra.mxu0 0
        %1986 = vmatprep.subr.bf16.mxu0 0
        %1987 = vmatpush1.bf16.msra.mxu0 0
        %1988 = vmatprep.subr.bf16.mxu0 0
        %1989 = vmatpush1.bf16.msra.mxu0 0
        %1990 = vmatprep.subr.bf16.mxu0 0
        %1991 = vmatpush1.bf16.msra.mxu0 0
        %1992 = vmatprep.subr.bf16.mxu0 0
        %1993 = vmatpush1.bf16.msra.mxu0 0
        %1994 = vmatprep.subr.bf16.mxu0 0
        %1995 = vmatpush1.bf16.msra.mxu0 0
        %1996 = vmatprep.subr.bf16.mxu0 0
        %1997 = vmatpush1.bf16.msra.mxu0 0
        %1998 = vmatprep.subr.bf16.mxu0 0
        %1999 = vmatpush1.bf16.msra.mxu0 %v1934
        %2000 = vmatprep.subr.bf16.mxu0 0
        %2001 = vmatpush2.bf16.msra.mxu0 0
        %2002 = vmatprep.subr.bf16.mxu0 0
        %2003 = vmatpush2.bf16.msra.mxu0 0
        %2004 = vmatprep.subr.bf16.mxu0 0
        %2005 = vmatpush2.bf16.msra.mxu0 0
        %2006 = vmatprep.subr.bf16.mxu0 0
        %2007 = vmatpush2.bf16.msra.mxu0 0
        %2008 = vmatprep.subr.bf16.mxu0 0
        %2009 = vmatpush2.bf16.msra.mxu0 0
        %2010 = vmatprep.subr.bf16.mxu0 0
        %2011 = vmatpush2.bf16.msra.mxu0 0
        %2012 = vmatprep.subr.bf16.mxu0 0
        %2013 = vmatpush2.bf16.msra.mxu0 0
        %2014 = vmatprep.subr.bf16.mxu0 0
        %2015 = vmatpush2.bf16.msra.mxu0 0
        %2016 = vmatprep.mubr.bf16.mxu0 0
        %2017 = vmatmul.mubr.bf16.gmra.mxu0 %v1939
        %v2018 = vpop.f32.mrf.mxu0
        %v2019 = vadd.f32 0.0, %v2018
        %v2020 = vpop.f32.mrf.mxu0
        %v2021 = vpop.f32.mrf.mxu0
        %v2022 = vadd.f32 0.0, %v2021
        %v2023 = vpop.f32.mrf.mxu0
        %2024 = vdwg.mxu0
        %v2025 = vadd.f32 %v1904, %v1976
        %v2026 = vadd.f32 %v1905, %v1978
        %v2027 = vadd.f32 %v1906, %v2019
        %v2028 = vadd.f32 %v1907, %v1980
        %v2029 = vadd.f32 %v1908, %v1982
        %v2030 = vadd.f32 %v1909, %v2022
        %s2031 = scalar_lea.vmem [#allocation8], 40
        %v2032 = vld [vmem:[%s2031] sm:$0xf]
        %v2033 = vld [vmem:[%s2031 + $0x4] sm:$0xf]
        %v2036 = vunpack.c.l.b16 %v2032
        %v2037 = vunpack.c.l.b16 %v2033
        %v2038 = vpack.c.b16 %v2037, %v2036
        %2039 = vrot.lane.b32.xlu0 %v1932, 127
        %v2040 = vpop.permute.xlu0 %2039
        %2041 = vrot.lane.b32.xlu0 %v1933, 127
        %v2042 = vpop.permute.xlu0 %2041
        %2043 = vrot.lane.b32.xlu0 %v1934, 127
        %v2044 = vpop.permute.xlu0 %2043
        %vm2045 = vcmask 1039360
        %v2046 = vsel %vm2045, %v2040, %v2042
        %v2047 = vsel %vm2045, %v2042, %v2044
        %v2052 = vsel %vm358, %v2038, 0
        %2054 = vmatprep.subr.bf16.mxu0 0
        %2055 = vmatpush1.bf16.msra.mxu0 0
        %2056 = vmatprep.subr.bf16.mxu0 0
        %2057 = vmatpush1.bf16.msra.mxu0 0
        %2058 = vmatprep.subr.bf16.mxu0 0
        %2059 = vmatpush1.bf16.msra.mxu0 0
        %2060 = vmatprep.subr.bf16.mxu0 0
        %2061 = vmatpush1.bf16.msra.mxu0 0
        %2062 = vmatprep.subr.bf16.mxu0 0
        %2063 = vmatpush1.bf16.msra.mxu0 0
        %2064 = vmatprep.subr.bf16.mxu0 0
        %2065 = vmatpush1.bf16.msra.mxu0 0
        %2066 = vmatprep.subr.bf16.mxu0 0
        %2067 = vmatpush1.bf16.msra.mxu0 0
        %2068 = vmatprep.subr.bf16.mxu0 %v2047
        %2069 = vmatpush1.bf16.msra.mxu0 %v2046
        %2070 = vmatprep.subr.bf16.mxu0 0
        %2071 = vmatpush2.bf16.msra.mxu0 0
        %2072 = vmatprep.subr.bf16.mxu0 0
        %2073 = vmatpush2.bf16.msra.mxu0 0
        %2074 = vmatprep.subr.bf16.mxu0 0
        %2075 = vmatpush2.bf16.msra.mxu0 0
        %2076 = vmatprep.subr.bf16.mxu0 0
        %2077 = vmatpush2.bf16.msra.mxu0 0
        %2078 = vmatprep.subr.bf16.mxu0 0
        %2079 = vmatpush2.bf16.msra.mxu0 0
        %2080 = vmatprep.subr.bf16.mxu0 0
        %2081 = vmatpush2.bf16.msra.mxu0 0
        %2082 = vmatprep.subr.bf16.mxu0 0
        %2083 = vmatpush2.bf16.msra.mxu0 0
        %2084 = vmatprep.subr.bf16.mxu0 0
        %2085 = vmatpush2.bf16.msra.mxu0 0
        %2086 = vmatprep.mubr.bf16.mxu0 0
        %2087 = vmatmul.mubr.bf16.gmra.mxu0 %v2052
        %v2088 = vpop.f32.mrf.mxu0
        %v2089 = vadd.f32 0.0, %v2088
        %v2090 = vpop.f32.mrf.mxu0
        %v2091 = vadd.f32 0.0, %v2090
        %v2092 = vpop.f32.mrf.mxu0
        %v2093 = vadd.f32 0.0, %v2092
        %v2094 = vpop.f32.mrf.mxu0
        %v2095 = vadd.f32 0.0, %v2094
        %2096 = vdwg.mxu0
        %2097 = vmatprep.subr.bf16.mxu0 0
        %2098 = vmatpush1.bf16.msra.mxu0 0
        %2099 = vmatprep.subr.bf16.mxu0 0
        %2100 = vmatpush1.bf16.msra.mxu0 0
        %2101 = vmatprep.subr.bf16.mxu0 0
        %2102 = vmatpush1.bf16.msra.mxu0 0
        %2103 = vmatprep.subr.bf16.mxu0 0
        %2104 = vmatpush1.bf16.msra.mxu0 0
        %2105 = vmatprep.subr.bf16.mxu0 0
        %2106 = vmatpush1.bf16.msra.mxu0 0
        %2107 = vmatprep.subr.bf16.mxu0 0
        %2108 = vmatpush1.bf16.msra.mxu0 0
        %2109 = vmatprep.subr.bf16.mxu0 0
        %2110 = vmatpush1.bf16.msra.mxu0 0
        %2111 = vmatprep.subr.bf16.mxu0 0
        %2112 = vmatpush1.bf16.msra.mxu0 %v2044
        %2113 = vmatprep.subr.bf16.mxu0 0
        %2114 = vmatpush2.bf16.msra.mxu0 0
        %2115 = vmatprep.subr.bf16.mxu0 0
        %2116 = vmatpush2.bf16.msra.mxu0 0
        %2117 = vmatprep.subr.bf16.mxu0 0
        %2118 = vmatpush2.bf16.msra.mxu0 0
        %2119 = vmatprep.subr.bf16.mxu0 0
        %2120 = vmatpush2.bf16.msra.mxu0 0
        %2121 = vmatprep.subr.bf16.mxu0 0
        %2122 = vmatpush2.bf16.msra.mxu0 0
        %2123 = vmatprep.subr.bf16.mxu0 0
        %2124 = vmatpush2.bf16.msra.mxu0 0
        %2125 = vmatprep.subr.bf16.mxu0 0
        %2126 = vmatpush2.bf16.msra.mxu0 0
        %2127 = vmatprep.subr.bf16.mxu0 0
        %2128 = vmatpush2.bf16.msra.mxu0 0
        %2129 = vmatprep.mubr.bf16.mxu0 0
        %2130 = vmatmul.mubr.bf16.gmra.mxu0 %v2052
        %v2131 = vpop.f32.mrf.mxu0
        %v2132 = vadd.f32 0.0, %v2131
        %v2133 = vpop.f32.mrf.mxu0
        %v2134 = vpop.f32.mrf.mxu0
        %v2135 = vadd.f32 0.0, %v2134
        %v2136 = vpop.f32.mrf.mxu0
        %2137 = vdwg.mxu0
        %v2138 = vadd.f32 %v2025, %v2089
        %v2139 = vadd.f32 %v2026, %v2091
        %v2140 = vadd.f32 %v2027, %v2132
        %v2141 = vadd.f32 %v2028, %v2093
        %v2142 = vadd.f32 %v2029, %v2095
        %v2143 = vadd.f32 %v2030, %v2135
        %s2144 = scalar_lea.vmem [#allocation8], 48
        %v2145 = vld [vmem:[%s2144] sm:$0xf]
        %v2146 = vld [vmem:[%s2144 + $0x4] sm:$0xf]
        %v2149 = vunpack.c.l.b16 %v2145
        %v2150 = vunpack.c.l.b16 %v2146
        %v2151 = vpack.c.b16 %v2150, %v2149
        %2152 = vrot.lane.b32.xlu0 %v1932, 111
        %v2153 = vpop.permute.xlu0 %2152
        %2154 = vrot.lane.b32.xlu0 %v1933, 111
        %v2155 = vpop.permute.xlu0 %2154
        %2156 = vrot.lane.b32.xlu0 %v1934, 111
        %v2157 = vpop.permute.xlu0 %2156
        %v2158 = vsel %vm352, %v2153, %v2155
        %v2159 = vsel %vm352, %v2155, %v2157
        %v2164 = vsel %vm358, %v2151, 0
        %2166 = vmatprep.subr.bf16.mxu0 0
        %2167 = vmatpush1.bf16.msra.mxu0 0
        %2168 = vmatprep.subr.bf16.mxu0 0
        %2169 = vmatpush1.bf16.msra.mxu0 0
        %2170 = vmatprep.subr.bf16.mxu0 0
        %2171 = vmatpush1.bf16.msra.mxu0 0
        %2172 = vmatprep.subr.bf16.mxu0 0
        %2173 = vmatpush1.bf16.msra.mxu0 0
        %2174 = vmatprep.subr.bf16.mxu0 0
        %2175 = vmatpush1.bf16.msra.mxu0 0
        %2176 = vmatprep.subr.bf16.mxu0 0
        %2177 = vmatpush1.bf16.msra.mxu0 0
        %2178 = vmatprep.subr.bf16.mxu0 0
        %2179 = vmatpush1.bf16.msra.mxu0 0
        %2180 = vmatprep.subr.bf16.mxu0 %v2159
        %2181 = vmatpush1.bf16.msra.mxu0 %v2158
        %2182 = vmatprep.subr.bf16.mxu0 0
        %2183 = vmatpush2.bf16.msra.mxu0 0
        %2184 = vmatprep.subr.bf16.mxu0 0
        %2185 = vmatpush2.bf16.msra.mxu0 0
        %2186 = vmatprep.subr.bf16.mxu0 0
        %2187 = vmatpush2.bf16.msra.mxu0 0
        %2188 = vmatprep.subr.bf16.mxu0 0
        %2189 = vmatpush2.bf16.msra.mxu0 0
        %2190 = vmatprep.subr.bf16.mxu0 0
        %2191 = vmatpush2.bf16.msra.mxu0 0
        %2192 = vmatprep.subr.bf16.mxu0 0
        %2193 = vmatpush2.bf16.msra.mxu0 0
        %2194 = vmatprep.subr.bf16.mxu0 0
        %2195 = vmatpush2.bf16.msra.mxu0 0
        %2196 = vmatprep.subr.bf16.mxu0 0
        %2197 = vmatpush2.bf16.msra.mxu0 0
        %2198 = vmatprep.mubr.bf16.mxu0 0
        %2199 = vmatmul.mubr.bf16.gmra.mxu0 %v2164
        %v2200 = vpop.f32.mrf.mxu0
        %v2201 = vadd.f32 0.0, %v2200
        %v2202 = vpop.f32.mrf.mxu0
        %v2203 = vadd.f32 0.0, %v2202
        %v2204 = vpop.f32.mrf.mxu0
        %v2205 = vadd.f32 0.0, %v2204
        %v2206 = vpop.f32.mrf.mxu0
        %v2207 = vadd.f32 0.0, %v2206
        %2208 = vdwg.mxu0
        %2209 = vmatprep.subr.bf16.mxu0 0
        %2210 = vmatpush1.bf16.msra.mxu0 0
        %2211 = vmatprep.subr.bf16.mxu0 0
        %2212 = vmatpush1.bf16.msra.mxu0 0
        %2213 = vmatprep.subr.bf16.mxu0 0
        %2214 = vmatpush1.bf16.msra.mxu0 0
        %2215 = vmatprep.subr.bf16.mxu0 0
        %2216 = vmatpush1.bf16.msra.mxu0 0
        %2217 = vmatprep.subr.bf16.mxu0 0
        %2218 = vmatpush1.bf16.msra.mxu0 0
        %2219 = vmatprep.subr.bf16.mxu0 0
        %2220 = vmatpush1.bf16.msra.mxu0 0
        %2221 = vmatprep.subr.bf16.mxu0 0
        %2222 = vmatpush1.bf16.msra.mxu0 0
        %2223 = vmatprep.subr.bf16.mxu0 0
        %2224 = vmatpush1.bf16.msra.mxu0 %v2157
        %2225 = vmatprep.subr.bf16.mxu0 0
        %2226 = vmatpush2.bf16.msra.mxu0 0
        %2227 = vmatprep.subr.bf16.mxu0 0
        %2228 = vmatpush2.bf16.msra.mxu0 0
        %2229 = vmatprep.subr.bf16.mxu0 0
        %2230 = vmatpush2.bf16.msra.mxu0 0
        %2231 = vmatprep.subr.bf16.mxu0 0
        %2232 = vmatpush2.bf16.msra.mxu0 0
        %2233 = vmatprep.subr.bf16.mxu0 0
        %2234 = vmatpush2.bf16.msra.mxu0 0
        %2235 = vmatprep.subr.bf16.mxu0 0
        %2236 = vmatpush2.bf16.msra.mxu0 0
        %2237 = vmatprep.subr.bf16.mxu0 0
        %2238 = vmatpush2.bf16.msra.mxu0 0
        %2239 = vmatprep.subr.bf16.mxu0 0
        %2240 = vmatpush2.bf16.msra.mxu0 0
        %2241 = vmatprep.mubr.bf16.mxu0 0
        %2242 = vmatmul.mubr.bf16.gmra.mxu0 %v2164
        %v2243 = vpop.f32.mrf.mxu0
        %v2244 = vadd.f32 0.0, %v2243
        %v2245 = vpop.f32.mrf.mxu0
        %v2246 = vpop.f32.mrf.mxu0
        %v2247 = vadd.f32 0.0, %v2246
        %v2248 = vpop.f32.mrf.mxu0
        %2249 = vdwg.mxu0
        %v2250 = vadd.f32 %v2138, %v2201
        %v2251 = vadd.f32 %v2139, %v2203
        %v2252 = vadd.f32 %v2140, %v2244
        %v2253 = vadd.f32 %v2141, %v2205
        %v2254 = vadd.f32 %v2142, %v2207
        %v2255 = vadd.f32 %v2143, %v2247
        %s2256 = scalar_lea.vmem [#allocation8], 56
        %v2257 = vld [vmem:[%s2256] sm:$0xf]
        %v2258 = vld [vmem:[%s2256 + $0x4] sm:$0xf]
        %v2261 = vunpack.c.l.b16 %v2257
        %v2262 = vunpack.c.l.b16 %v2258
        %v2263 = vpack.c.b16 %v2262, %v2261
        %2264 = vrot.lane.b32.xlu0 %v1932, 110
        %v2265 = vpop.permute.xlu0 %2264
        %2266 = vrot.lane.b32.xlu0 %v1933, 110
        %v2267 = vpop.permute.xlu0 %2266
        %2268 = vrot.lane.b32.xlu0 %v1934, 110
        %v2269 = vpop.permute.xlu0 %2268
        %v2270 = vsel %vm466, %v2265, %v2267
        %v2271 = vsel %vm466, %v2267, %v2269
        %v2276 = vsel %vm358, %v2263, 0
        %2278 = vmatprep.subr.bf16.mxu0 0
        %2279 = vmatpush1.bf16.msra.mxu0 0
        %2280 = vmatprep.subr.bf16.mxu0 0
        %2281 = vmatpush1.bf16.msra.mxu0 0
        %2282 = vmatprep.subr.bf16.mxu0 0
        %2283 = vmatpush1.bf16.msra.mxu0 0
        %2284 = vmatprep.subr.bf16.mxu0 0
        %2285 = vmatpush1.bf16.msra.mxu0 0
        %2286 = vmatprep.subr.bf16.mxu0 0
        %2287 = vmatpush1.bf16.msra.mxu0 0
        %2288 = vmatprep.subr.bf16.mxu0 0
        %2289 = vmatpush1.bf16.msra.mxu0 0
        %2290 = vmatprep.subr.bf16.mxu0 0
        %2291 = vmatpush1.bf16.msra.mxu0 0
        %2292 = vmatprep.subr.bf16.mxu0 %v2271
        %2293 = vmatpush1.bf16.msra.mxu0 %v2270
        %2294 = vmatprep.subr.bf16.mxu0 0
        %2295 = vmatpush2.bf16.msra.mxu0 0
        %2296 = vmatprep.subr.bf16.mxu0 0
        %2297 = vmatpush2.bf16.msra.mxu0 0
        %2298 = vmatprep.subr.bf16.mxu0 0
        %2299 = vmatpush2.bf16.msra.mxu0 0
        %2300 = vmatprep.subr.bf16.mxu0 0
        %2301 = vmatpush2.bf16.msra.mxu0 0
        %2302 = vmatprep.subr.bf16.mxu0 0
        %2303 = vmatpush2.bf16.msra.mxu0 0
        %2304 = vmatprep.subr.bf16.mxu0 0
        %2305 = vmatpush2.bf16.msra.mxu0 0
        %2306 = vmatprep.subr.bf16.mxu0 0
        %2307 = vmatpush2.bf16.msra.mxu0 0
        %2308 = vmatprep.subr.bf16.mxu0 0
        %2309 = vmatpush2.bf16.msra.mxu0 0
        %2310 = vmatprep.mubr.bf16.mxu0 0
        %2311 = vmatmul.mubr.bf16.gmra.mxu0 %v2276
        %v2312 = vpop.f32.mrf.mxu0
        %v2313 = vadd.f32 0.0, %v2312
        %v2314 = vpop.f32.mrf.mxu0
        %v2315 = vadd.f32 0.0, %v2314
        %v2316 = vpop.f32.mrf.mxu0
        %v2317 = vadd.f32 0.0, %v2316
        %v2318 = vpop.f32.mrf.mxu0
        %v2319 = vadd.f32 0.0, %v2318
        %2320 = vdwg.mxu0
        %2321 = vmatprep.subr.bf16.mxu0 0
        %2322 = vmatpush1.bf16.msra.mxu0 0
        %2323 = vmatprep.subr.bf16.mxu0 0
        %2324 = vmatpush1.bf16.msra.mxu0 0
        %2325 = vmatprep.subr.bf16.mxu0 0
        %2326 = vmatpush1.bf16.msra.mxu0 0
        %2327 = vmatprep.subr.bf16.mxu0 0
        %2328 = vmatpush1.bf16.msra.mxu0 0
        %2329 = vmatprep.subr.bf16.mxu0 0
        %2330 = vmatpush1.bf16.msra.mxu0 0
        %2331 = vmatprep.subr.bf16.mxu0 0
        %2332 = vmatpush1.bf16.msra.mxu0 0
        %2333 = vmatprep.subr.bf16.mxu0 0
        %2334 = vmatpush1.bf16.msra.mxu0 0
        %2335 = vmatprep.subr.bf16.mxu0 0
        %2336 = vmatpush1.bf16.msra.mxu0 %v2269
        %2337 = vmatprep.subr.bf16.mxu0 0
        %2338 = vmatpush2.bf16.msra.mxu0 0
        %2339 = vmatprep.subr.bf16.mxu0 0
        %2340 = vmatpush2.bf16.msra.mxu0 0
        %2341 = vmatprep.subr.bf16.mxu0 0
        %2342 = vmatpush2.bf16.msra.mxu0 0
        %2343 = vmatprep.subr.bf16.mxu0 0
        %2344 = vmatpush2.bf16.msra.mxu0 0
        %2345 = vmatprep.subr.bf16.mxu0 0
        %2346 = vmatpush2.bf16.msra.mxu0 0
        %2347 = vmatprep.subr.bf16.mxu0 0
        %2348 = vmatpush2.bf16.msra.mxu0 0
        %2349 = vmatprep.subr.bf16.mxu0 0
        %2350 = vmatpush2.bf16.msra.mxu0 0
        %2351 = vmatprep.subr.bf16.mxu0 0
        %2352 = vmatpush2.bf16.msra.mxu0 0
        %2353 = vmatprep.mubr.bf16.mxu0 0
        %2354 = vmatmul.mubr.bf16.gmra.mxu0 %v2276
        %v2355 = vpop.f32.mrf.mxu0
        %v2356 = vadd.f32 0.0, %v2355
        %v2357 = vpop.f32.mrf.mxu0
        %v2358 = vpop.f32.mrf.mxu0
        %v2359 = vadd.f32 0.0, %v2358
        %v2360 = vpop.f32.mrf.mxu0
        %2361 = vdwg.mxu0
        %v2362 = vadd.f32 %v2250, %v2313
        %v2363 = vadd.f32 %v2251, %v2315
        %v2364 = vadd.f32 %v2252, %v2356
        %v2365 = vadd.f32 %v2253, %v2317
        %v2366 = vadd.f32 %v2254, %v2319
        %v2367 = vadd.f32 %v2255, %v2359
        %s2368 = scalar_lea.vmem [#allocation8], 64
        %v2369 = vld [vmem:[%s2368] sm:$0xf]
        %v2370 = vld [vmem:[%s2368 + $0x4] sm:$0xf]
        %v2373 = vunpack.c.l.b16 %v2369
        %v2374 = vunpack.c.l.b16 %v2370
        %v2375 = vpack.c.b16 %v2374, %v2373
        %2376 = vrot.lane.b32.xlu0 %v1932, 109
        %v2377 = vpop.permute.xlu0 %2376
        %2378 = vrot.lane.b32.xlu0 %v1933, 109
        %v2379 = vpop.permute.xlu0 %2378
        %2380 = vrot.lane.b32.xlu0 %v1934, 109
        %v2381 = vpop.permute.xlu0 %2380
        %v2382 = vsel %vm579, %v2377, %v2379
        %v2383 = vsel %vm579, %v2379, %v2381
        %v2388 = vsel %vm358, %v2375, 0
        %2390 = vmatprep.subr.bf16.mxu0 0
        %2391 = vmatpush1.bf16.msra.mxu0 0
        %2392 = vmatprep.subr.bf16.mxu0 0
        %2393 = vmatpush1.bf16.msra.mxu0 0
        %2394 = vmatprep.subr.bf16.mxu0 0
        %2395 = vmatpush1.bf16.msra.mxu0 0
        %2396 = vmatprep.subr.bf16.mxu0 0
        %2397 = vmatpush1.bf16.msra.mxu0 0
        %2398 = vmatprep.subr.bf16.mxu0 0
        %2399 = vmatpush1.bf16.msra.mxu0 0
        %2400 = vmatprep.subr.bf16.mxu0 0
        %2401 = vmatpush1.bf16.msra.mxu0 0
        %2402 = vmatprep.subr.bf16.mxu0 0
        %2403 = vmatpush1.bf16.msra.mxu0 0
        %2404 = vmatprep.subr.bf16.mxu0 %v2383
        %2405 = vmatpush1.bf16.msra.mxu0 %v2382
        %2406 = vmatprep.subr.bf16.mxu0 0
        %2407 = vmatpush2.bf16.msra.mxu0 0
        %2408 = vmatprep.subr.bf16.mxu0 0
        %2409 = vmatpush2.bf16.msra.mxu0 0
        %2410 = vmatprep.subr.bf16.mxu0 0
        %2411 = vmatpush2.bf16.msra.mxu0 0
        %2412 = vmatprep.subr.bf16.mxu0 0
        %2413 = vmatpush2.bf16.msra.mxu0 0
        %2414 = vmatprep.subr.bf16.mxu0 0
        %2415 = vmatpush2.bf16.msra.mxu0 0
        %2416 = vmatprep.subr.bf16.mxu0 0
        %2417 = vmatpush2.bf16.msra.mxu0 0
        %2418 = vmatprep.subr.bf16.mxu0 0
        %2419 = vmatpush2.bf16.msra.mxu0 0
        %2420 = vmatprep.subr.bf16.mxu0 0
        %2421 = vmatpush2.bf16.msra.mxu0 0
        %2422 = vmatprep.mubr.bf16.mxu0 0
        %2423 = vmatmul.mubr.bf16.gmra.mxu0 %v2388
        %v2424 = vpop.f32.mrf.mxu0
        %v2425 = vadd.f32 0.0, %v2424
        %v2426 = vpop.f32.mrf.mxu0
        %v2427 = vadd.f32 0.0, %v2426
        %v2428 = vpop.f32.mrf.mxu0
        %v2429 = vadd.f32 0.0, %v2428
        %v2430 = vpop.f32.mrf.mxu0
        %v2431 = vadd.f32 0.0, %v2430
        %2432 = vdwg.mxu0
        %2433 = vmatprep.subr.bf16.mxu0 0
        %2434 = vmatpush1.bf16.msra.mxu0 0
        %2435 = vmatprep.subr.bf16.mxu0 0
        %2436 = vmatpush1.bf16.msra.mxu0 0
        %2437 = vmatprep.subr.bf16.mxu0 0
        %2438 = vmatpush1.bf16.msra.mxu0 0
        %2439 = vmatprep.subr.bf16.mxu0 0
        %2440 = vmatpush1.bf16.msra.mxu0 0
        %2441 = vmatprep.subr.bf16.mxu0 0
        %2442 = vmatpush1.bf16.msra.mxu0 0
        %2443 = vmatprep.subr.bf16.mxu0 0
        %2444 = vmatpush1.bf16.msra.mxu0 0
        %2445 = vmatprep.subr.bf16.mxu0 0
        %2446 = vmatpush1.bf16.msra.mxu0 0
        %2447 = vmatprep.subr.bf16.mxu0 0
        %2448 = vmatpush1.bf16.msra.mxu0 %v2381
        %2449 = vmatprep.subr.bf16.mxu0 0
        %2450 = vmatpush2.bf16.msra.mxu0 0
        %2451 = vmatprep.subr.bf16.mxu0 0
        %2452 = vmatpush2.bf16.msra.mxu0 0
        %2453 = vmatprep.subr.bf16.mxu0 0
        %2454 = vmatpush2.bf16.msra.mxu0 0
        %2455 = vmatprep.subr.bf16.mxu0 0
        %2456 = vmatpush2.bf16.msra.mxu0 0
        %2457 = vmatprep.subr.bf16.mxu0 0
        %2458 = vmatpush2.bf16.msra.mxu0 0
        %2459 = vmatprep.subr.bf16.mxu0 0
        %2460 = vmatpush2.bf16.msra.mxu0 0
        %2461 = vmatprep.subr.bf16.mxu0 0
        %2462 = vmatpush2.bf16.msra.mxu0 0
        %2463 = vmatprep.subr.bf16.mxu0 0
        %2464 = vmatpush2.bf16.msra.mxu0 0
        %2465 = vmatprep.mubr.bf16.mxu0 0
        %2466 = vmatmul.mubr.bf16.gmra.mxu0 %v2388
        %v2467 = vpop.f32.mrf.mxu0
        %v2468 = vadd.f32 0.0, %v2467
        %v2469 = vpop.f32.mrf.mxu0
        %v2470 = vpop.f32.mrf.mxu0
        %v2471 = vadd.f32 0.0, %v2470
        %v2472 = vpop.f32.mrf.mxu0
        %2473 = vdwg.mxu0
        %v2474 = vadd.f32 %v2362, %v2425
        %v2475 = vadd.f32 %v2363, %v2427
        %v2476 = vadd.f32 %v2364, %v2468
        %v2477 = vadd.f32 %v2365, %v2429
        %v2478 = vadd.f32 %v2366, %v2431
        %v2479 = vadd.f32 %v2367, %v2471
        %v2480 = vmul.f32 %v2474, 0.01
        %v2481 = vmul.f32 %v2475, 0.01
        %v2482 = vmul.f32 %v2476, 0.01
        %v2483 = vmul.f32 %v2477, 0.01
        %v2484 = vmul.f32 %v2478, 0.01
        %v2485 = vmul.f32 %v2479, 0.01
        %v2486 = vmax.f32 %v2474, %v2480
        %v2487 = vmax.f32 %v2475, %v2481
        %v2488 = vmax.f32 %v2476, %v2482
        %v2489 = vmax.f32 %v2477, %v2483
        %v2490 = vmax.f32 %v2478, %v2484
        %v2491 = vmax.f32 %v2479, %v2485
        %2492 = vst [vmem:[%s298] sm:$0xff] %v2486
        %2493 = vst [vmem:[%s298 + $0x8] sm:$0xff] %v2487
        %vm2494 = vcmask 556032
        %2495 = vst.msk [vmem:[%s298 + $0x10] sm:$0xff] %vm2494, %v2488
        %2496 = vst [vmem:[%s298 + $0x18] sm:$0xff] %v2489
        %2497 = vst [vmem:[%s298 + $0x20] sm:$0xff] %v2490
        %2498 = vst.msk [vmem:[%s298 + $0x28] sm:$0xff] %vm2494, %v2491
        %s2499 = sand.u32 %s163, 1
        %s2500 = scalar_lea.sflag [#allocation5], %s2499
        %s2501 = sand.u32 %s163, 1
        %s2502 = smul.addr %s2501, 48
        %s2503 = scalar_lea.vmem [#allocation9], %s2502
        // Predicated region
        $region61: #{tpu_custom_call.1} parent=43 // pred_check
          %p2504 = pneg %p173
        $region62: #{tpu_custom_call.1} parent=43 // pred_check_branch
          %2506 = sbr.rel (%p2504) target = $region64
        $region63: #{tpu_custom_call.1} parent=43 // pred_region
          %s2508 = ssub.s32 768, 768
          %2509 = vsyncadd %s2500, %s2508
          %s2510 = smul.addr %s24, 6
          %s2511 = smul.addr %s2510, 128
          %s2512 = scalar_lea.hbm %s6, %s2511
          %s2513 = sshll.u32 %s2503, 4
          %s2514 = int_to_ptr.vmem [resolvable:$true] %s2513
          %2519 = dma.vmem_to_hbm [thread:$0]  %s2514, 768, %s2512, %s2500, 384, 384, 24
        $region64: #{tpu_custom_call.1} parent=43 // pred_fallthru
          _
      $region44: #{tpu_custom_call.1} parent=5 // pred_fallthru
        _
      %p2520 = scmp.le.s32.totalorder 2, %s19
      // Predicated region
      $region65: #{tpu_custom_call.1} parent=5 // pred_check
        %p2521 = pneg %p2520
      $region66: #{tpu_custom_call.1} parent=5 // pred_check_branch
        %2523 = sbr.rel (%p2521) target = $region68
      $region67: #{tpu_custom_call.1} parent=5 // pred_region
        %s2524 = ssub.s32 %s19, 2
        // Predicated region
        $region69: #{tpu_custom_call.1} parent=67 // pred_check
          %p2525 = pneg %p179
        $region70: #{tpu_custom_call.1} parent=67 // pred_check_branch
          %2527 = sbr.rel (%p2525) target = $region72
        $region71: #{tpu_custom_call.1} parent=67 // pred_region
          %s2528 = sand.u32 %s164, 1
          %s2529 = scalar_lea.sflag [#allocation5], %s2528
          %s2530 = sand.u32 %s164, 1
          %s2531 = smul.addr %s2530, 48
          %s2532 = scalar_lea.vmem [#allocation9], %s2531
          %2533 = dma.done %s2529, 768
        $region72: #{tpu_custom_call.1} parent=67 // pred_fallthru
          _
      $region68: #{tpu_custom_call.1} parent=5 // pred_fallthru
        _
    $region6: #{tpu_custom_call.1} parent=1 // loop_footer
      %s23 = sadd.s32 1, %s19
    $region7: #{tpu_custom_call.1} parent=1 // loop_footer_branch
      %18 = sbr.rel target = $region3
    $region8: #{tpu_custom_call.1} parent=1 // loop_exit
      _
    %2534 = vsyncpa [#allocation4], 1
    %s2535 = scalar_lea.sflag [#allocation4], 1
    %2536 = vsyncpa %s2535, 1
    %2537 = vsyncpa [#allocation7], 1
    %2538 = vsyncpa [#allocation5], 1
    %s2539 = scalar_lea.sflag [#allocation5], 1
    %2540 = vsyncpa %s2539, 1

</llo_original>
